<compile_context>
chip_gen: v5e
topology: v5e:2x2
jax: 0.10.0
libtpu: 0.0.40
codegen_flags: <defaults>
</compile_context>

<pallas_src>
import jax
import jax.numpy as jnp
from jax.experimental import pallas as pl
from jax.experimental.pallas import tpu as pltpu

# ----------------------------- model dims ---------------------------------
KERNEL = 16      # frontend frame size (conv kernel, in_channels=1)
STRIDE = 8       # frontend hop (conv stride)
C_FEAT = 32      # frontend output channels
H_FF = 64        # feed-forward hidden
D_OUT = 64       # encoder output dim

PACK = 4             # frames packed per kernel row (block-diagonal weights)
TILE_R_DEFAULT = 512  # packed rows per grid step (= 2048 frames)


def _round_up(x, m):
    return (x + m - 1) // m * m


def _block_diag(w, p):
    """(kin, kout) -> (p*kin, p*kout) block-diagonal repetition of w."""
    return jnp.kron(jnp.eye(p, dtype=w.dtype), w)


# ----------------------------- Pallas kernel -------------------------------
def encoder_kernel(x_ref, w0_ref, b0_ref, w1_ref, b1_ref, w2_ref, b2_ref, o_ref):
    # x_ref: (tile_r, PACK*KERNEL) bf16 -- PACK consecutive frames per row.
    x = x_ref[...]

    # frontend "conv": frames @ W0 (block-diag) + b0, ReLU.  f32 accumulation.
    f = jnp.dot(x, w0_ref[...], preferred_element_type=jnp.float32) + b0_ref[...]
    f = jnp.maximum(f, 0.0)                       # (tile_r, PACK*C_FEAT) f32

    # feed-forward block; bf16 confined to MXU operands, elementwise stays f32.
    h = jnp.dot(f.astype(jnp.bfloat16), w1_ref[...],
                preferred_element_type=jnp.float32) + b1_ref[...]
    h = jnp.maximum(h, 0.0)                       # (tile_r, PACK*H_FF) f32

    o = jnp.dot(h.astype(jnp.bfloat16), w2_ref[...],
                preferred_element_type=jnp.float32) + b2_ref[...]
    o_ref[...] = o.astype(o_ref.dtype)            # (tile_r, PACK*D_OUT) lane-dense


def encoder_pallas(x, packed_params, tile_r):
    """x: [R, PACK*KERNEL] bf16 -> packed encoder features [R, PACK*D_OUT] f32."""
    w0, b0, w1, b1, w2, b2 = packed_params
    n_rows, k_in = x.shape
    d_pack = w2.shape[1]
    assert n_rows % tile_r == 0
    grid = (n_rows // tile_r,)

    full = lambda i: (0, 0)   # weights / biases: same (full) block every step

    flops = 2 * n_rows * (k_in * w0.shape[1]
                          + w1.shape[0] * w1.shape[1]
                          + w2.shape[0] * w2.shape[1])
    bytes_accessed = (x.size * x.dtype.itemsize
                      + sum(p.size * p.dtype.itemsize for p in packed_params)
                      + n_rows * d_pack * 4)

    return pl.pallas_call(
        encoder_kernel,
        out_shape=jax.ShapeDtypeStruct((n_rows, d_pack), jnp.float32),
        grid_spec=pl.GridSpec(
            grid=grid,
            in_specs=[
                pl.BlockSpec((tile_r, k_in), lambda i: (i, 0)),
                pl.BlockSpec(w0.shape, full),
                pl.BlockSpec(b0.shape, full),
                pl.BlockSpec(w1.shape, full),
                pl.BlockSpec(b1.shape, full),
                pl.BlockSpec(w2.shape, full),
                pl.BlockSpec(b2.shape, full),
            ],
            out_specs=pl.BlockSpec((tile_r, d_pack), lambda i: (i, 0)),
        ),
        compiler_params=pltpu.CompilerParams(
            dimension_semantics=("parallel",),
        ),
        cost_estimate=pl.CostEstimate(
            flops=flops, transcendentals=0, bytes_accessed=bytes_accessed),
    )(x, w0, b0, w1, b1, w2, b2)


# ----------------------------- Transcriber wrapper -------------------------
def init_params(key):
    k0, k1, k2, k3, k4, k5 = jax.random.split(key, 6)
    w0 = 0.1 * jax.random.normal(k0, (KERNEL, C_FEAT), jnp.float32)
    b0 = 0.1 * jax.random.normal(k3, (1, C_FEAT), jnp.float32)
    w1 = 0.1 * jax.random.normal(k1, (C_FEAT, H_FF), jnp.float32)
    b1 = 0.1 * jax.random.normal(k4, (1, H_FF), jnp.float32)
    w2 = 0.1 * jax.random.normal(k2, (H_FF, D_OUT), jnp.float32)
    b2 = 0.1 * jax.random.normal(k5, (1, D_OUT), jnp.float32)
    return (w0, b0, w1, b1, w2, b2)


def _pack_params(params):
    """Original per-frame weights -> PACK-frame block-diagonal bf16 weights."""
    w0, b0, w1, b1, w2, b2 = params
    w0p = _block_diag(w0.astype(jnp.bfloat16), PACK)   # (64, 128)
    w1p = _block_diag(w1.astype(jnp.bfloat16), PACK)   # (128, 256)
    w2p = _block_diag(w2.astype(jnp.bfloat16), PACK)   # (256, 256)
    b0p = jnp.tile(b0, (1, PACK))                      # f32 (1, 128)
    b1p = jnp.tile(b1, (1, PACK))                      # f32 (1, 256)
    b2p = jnp.tile(b2, (1, PACK))                      # f32 (1, 256)
    return (w0p, b0p, w1p, b1p, w2p, b2p)


def transcriber_forward(audio, lengths, params):
    """
    Mirrors Transcriber.forward (OFFLINE mode):
      audio:   [B, T, 1]  raw samples
      lengths: [B]        valid sample counts
    Returns (encoder_out [B, T', D_OUT], encoder_out_lengths [B]).
    """
    B, T, _ = audio.shape
    t_out = (T - KERNEL) // STRIDE + 1

    # Frame construction without gather: each frame is the concat of two
    # consecutive 8-sample blocks (kernel=16, stride=8) -> two contiguous
    # slices + concat (cheap, no XLA gather).
    a = audio[:, :, 0]
    lo = a[:, :t_out * STRIDE].reshape(B, t_out, STRIDE)
    hi = a[:, STRIDE:STRIDE + t_out * STRIDE].reshape(B, t_out, STRIDE)
    frames = jnp.concatenate([lo, hi], axis=-1)                    # [B, T', 16]
    frames = frames.reshape(B * t_out, KERNEL).astype(jnp.bfloat16)

    # Pack PACK frames per row; pad row count so the tile divides evenly.
    n_frames = B * t_out
    n_rows = pl.cdiv(n_frames, PACK)
    n_rows16 = _round_up(n_rows, 16)
    num_tiles = pl.cdiv(n_rows16, TILE_R_DEFAULT)
    tile_r = _round_up(pl.cdiv(n_rows16, num_tiles), 16)
    n_rows_pad = tile_r * num_tiles
    pad = n_rows_pad * PACK - n_frames
    if pad:
        frames = jnp.pad(frames, ((0, pad), (0, 0)))
    x = frames.reshape(n_rows_pad, PACK * KERNEL)                  # [R, 64]

    out = encoder_pallas(x, _pack_params(params), tile_r)          # [R, 256] f32
    out = out.reshape(n_rows_pad * PACK, D_OUT)                    # free reshape
    if pad:
        out = out[:n_frames]
    encoder_out = out.reshape(B, t_out, D_OUT)

    # downsampled lengths (Conv1d length formula), matching the subsampling.
    encoder_out_lengths = jnp.maximum(
        (lengths - KERNEL) // STRIDE + 1, 0).astype(jnp.int32)
    return encoder_out, encoder_out_lengths


# ----------------------------------- main -----------------------------------
if __name__ == "__main__":
    key = jax.random.PRNGKey(0)
    k_audio, k_params = jax.random.split(key)

    # ~0.5 s of "audio" per item: exercises multi-step grid, padding and slicing.
    B, T = 2, 8328                        # t_out = 1040, N = 2080 frames
    audio = jax.random.normal(k_audio, (B, T, 1), jnp.float32)
    lengths = jnp.array([T, T - 1000], jnp.int32)

    params = init_params(k_params)

    fwd = jax.jit(transcriber_forward)
    enc_out, enc_lens = fwd(audio, lengths, params)
    jax.block_until_ready(enc_out)
    jax.block_until_ready(enc_lens)

    # --------- plain-JAX reference (same bf16-operand / f32-accum recipe) -----
    t_out = (T - KERNEL) // STRIDE + 1
    a = audio[:, :, 0]
    lo = a[:, :t_out * STRIDE].reshape(B, t_out, STRIDE)
    hi = a[:, STRIDE:STRIDE + t_out * STRIDE].reshape(B, t_out, STRIDE)
    frames_ref = jnp.concatenate([lo, hi], -1).reshape(-1, KERNEL).astype(jnp.bfloat16)
    w0, b0, w1, b1, w2, b2 = params
    f = jnp.maximum(jnp.dot(frames_ref, w0.astype(jnp.bfloat16),
                            preferred_element_type=jnp.float32) + b0, 0.0)
    h = jnp.maximum(jnp.dot(f.astype(jnp.bfloat16), w1.astype(jnp.bfloat16),
                            preferred_element_type=jnp.float32) + b1, 0.0)
    ref = (jnp.dot(h.astype(jnp.bfloat16), w2.astype(jnp.bfloat16),
                   preferred_element_type=jnp.float32) + b2).reshape(B, t_out, D_OUT)

    assert enc_out.shape == (B, t_out, D_OUT)
    assert enc_lens.shape == (B,)
    assert jnp.allclose(enc_out, ref, atol=5e-3, rtol=5e-2), "mismatch vs reference"
    expected_lens = jnp.maximum((lengths - KERNEL) // STRIDE + 1, 0).astype(jnp.int32)
    assert jnp.array_equal(enc_lens, expected_lens), "length mismatch"

    print("KERNEL_OK")
</pallas_src>

<mosaic_0001>
module attributes {stable_mosaic.version = 11 : i64} {
  func.func @encoder_kernel(%arg0: i32, %arg1: memref<272x64xbf16, #tpu.memory_space<vmem>>, %arg2: memref<64x128xbf16, #tpu.memory_space<vmem>>, %arg3: memref<1x128xf32, #tpu.memory_space<vmem>>, %arg4: memref<128x256xbf16, #tpu.memory_space<vmem>>, %arg5: memref<1x256xf32, #tpu.memory_space<vmem>>, %arg6: memref<256x256xbf16, #tpu.memory_space<vmem>>, %arg7: memref<1x256xf32, #tpu.memory_space<vmem>>, %arg8: memref<272x256xf32, #tpu.memory_space<vmem>>) attributes {dimension_semantics = [#tpu.dimension_semantics<parallel>], iteration_bounds = array<i64: 2>, scalar_prefetch = 0 : i64, scratch_operands = 0 : i64, tpu.core_type = #tpu.core_type<tc>, window_params = [{transform_indices = @transform_0, window_bounds = array<i64: 272, 64>}, {pipeline_mode = #tpu.pipeline_mode<synchronous>, transform_indices = @transform_1, window_bounds = array<i64: 64, 128>}, {pipeline_mode = #tpu.pipeline_mode<synchronous>, transform_indices = @transform_2, window_bounds = array<i64: 1, 128>}, {pipeline_mode = #tpu.pipeline_mode<synchronous>, transform_indices = @transform_3, window_bounds = array<i64: 128, 256>}, {pipeline_mode = #tpu.pipeline_mode<synchronous>, transform_indices = @transform_4, window_bounds = array<i64: 1, 256>}, {pipeline_mode = #tpu.pipeline_mode<synchronous>, transform_indices = @transform_5, window_bounds = array<i64: 256, 256>}, {pipeline_mode = #tpu.pipeline_mode<synchronous>, transform_indices = @transform_6, window_bounds = array<i64: 1, 256>}, {transform_indices = @transform_7, window_bounds = array<i64: 272, 256>}]} {
    %c0 = arith.constant 0 : index
    %c0_0 = arith.constant 0 : index
    %0 = vector.load %arg1[%c0, %c0_0] : memref<272x64xbf16, #tpu.memory_space<vmem>>, vector<272x64xbf16>
    %c0_1 = arith.constant 0 : index
    %c0_2 = arith.constant 0 : index
    %1 = vector.load %arg2[%c0_1, %c0_2] : memref<64x128xbf16, #tpu.memory_space<vmem>>, vector<64x128xbf16>
    %cst = arith.constant dense<0.000000e+00> : vector<272x128xf32>
    %2 = tpu.matmul %0, %1, %cst {dimension_numbers = #tpu.dot_dimension_numbers<[1], [0], [0], [1], [0, 0, 1, 1], [], []>} : vector<272x64xbf16>, vector<64x128xbf16>, vector<272x128xf32> -> vector<272x128xf32>
    %c0_3 = arith.constant 0 : index
    %c0_4 = arith.constant 0 : index
    %3 = vector.load %arg3[%c0_3, %c0_4] : memref<1x128xf32, #tpu.memory_space<vmem>>, vector<1x128xf32>
    %4 = vector.broadcast %3 : vector<1x128xf32> to vector<272x128xf32>
    %5 = arith.addf %2, %4 : vector<272x128xf32>
    %cst_5 = arith.constant 0.000000e+00 : f32
    %6 = vector.broadcast %cst_5 : f32 to vector<272x128xf32>
    %7 = arith.maximumf %5, %6 : vector<272x128xf32>
    %8 = arith.truncf %7 : vector<272x128xf32> to vector<272x128xbf16>
    %c0_6 = arith.constant 0 : index
    %c0_7 = arith.constant 0 : index
    %9 = vector.load %arg4[%c0_6, %c0_7] : memref<128x256xbf16, #tpu.memory_space<vmem>>, vector<128x256xbf16>
    %cst_8 = arith.constant dense<0.000000e+00> : vector<272x256xf32>
    %10 = tpu.matmul %8, %9, %cst_8 {dimension_numbers = #tpu.dot_dimension_numbers<[1], [0], [0], [1], [0, 0, 1, 1], [], []>} : vector<272x128xbf16>, vector<128x256xbf16>, vector<272x256xf32> -> vector<272x256xf32>
    %c0_9 = arith.constant 0 : index
    %c0_10 = arith.constant 0 : index
    %11 = vector.load %arg5[%c0_9, %c0_10] : memref<1x256xf32, #tpu.memory_space<vmem>>, vector<1x256xf32>
    %12 = vector.broadcast %11 : vector<1x256xf32> to vector<272x256xf32>
    %13 = arith.addf %10, %12 : vector<272x256xf32>
    %cst_11 = arith.constant 0.000000e+00 : f32
    %14 = vector.broadcast %cst_11 : f32 to vector<272x256xf32>
    %15 = arith.maximumf %13, %14 : vector<272x256xf32>
    %16 = arith.truncf %15 : vector<272x256xf32> to vector<272x256xbf16>
    %c0_12 = arith.constant 0 : index
    %c0_13 = arith.constant 0 : index
    %17 = vector.load %arg6[%c0_12, %c0_13] : memref<256x256xbf16, #tpu.memory_space<vmem>>, vector<256x256xbf16>
    %cst_14 = arith.constant dense<0.000000e+00> : vector<272x256xf32>
    %18 = tpu.matmul %16, %17, %cst_14 {dimension_numbers = #tpu.dot_dimension_numbers<[1], [0], [0], [1], [0, 0, 1, 1], [], []>} : vector<272x256xbf16>, vector<256x256xbf16>, vector<272x256xf32> -> vector<272x256xf32>
    %c0_15 = arith.constant 0 : index
    %c0_16 = arith.constant 0 : index
    %19 = vector.load %arg7[%c0_15, %c0_16] : memref<1x256xf32, #tpu.memory_space<vmem>>, vector<1x256xf32>
    %20 = vector.broadcast %19 : vector<1x256xf32> to vector<272x256xf32>
    %21 = arith.addf %18, %20 : vector<272x256xf32>
    %c0_17 = arith.constant 0 : index
    %c0_18 = arith.constant 0 : index
    %22 = vector.load %arg8[%c0_17, %c0_18] : memref<272x256xf32, #tpu.memory_space<vmem>>, vector<272x256xf32>
    tpu.vector_store %arg8[%c0_17, %c0_18], %21 {strides = array<i32>} : memref<272x256xf32, #tpu.memory_space<vmem>>, vector<272x256xf32>,
    return
  }
  func.func @transform_0(%arg0: i32) -> (i32, i32) {
    %c0_i32 = arith.constant 0 : i32
    %c0_i32_0 = arith.constant 0 : i32
    return %arg0, %c0_i32 : i32, i32
  }
  func.func @transform_1(%arg0: i32) -> (i32, i32) {
    %c0_i32 = arith.constant 0 : i32
    %c0_i32_0 = arith.constant 0 : i32
    %c0_i32_1 = arith.constant 0 : i32
    return %c0_i32, %c0_i32_0 : i32, i32
  }
  func.func @transform_2(%arg0: i32) -> (i32, i32) {
    %c0_i32 = arith.constant 0 : i32
    %c0_i32_0 = arith.constant 0 : i32
    %c0_i32_1 = arith.constant 0 : i32
    return %c0_i32, %c0_i32_0 : i32, i32
  }
  func.func @transform_3(%arg0: i32) -> (i32, i32) {
    %c0_i32 = arith.constant 0 : i32
    %c0_i32_0 = arith.constant 0 : i32
    %c0_i32_1 = arith.constant 0 : i32
    return %c0_i32, %c0_i32_0 : i32, i32
  }
  func.func @transform_4(%arg0: i32) -> (i32, i32) {
    %c0_i32 = arith.constant 0 : i32
    %c0_i32_0 = arith.constant 0 : i32
    %c0_i32_1 = arith.constant 0 : i32
    return %c0_i32, %c0_i32_0 : i32, i32
  }
  func.func @transform_5(%arg0: i32) -> (i32, i32) {
    %c0_i32 = arith.constant 0 : i32
    %c0_i32_0 = arith.constant 0 : i32
    %c0_i32_1 = arith.constant 0 : i32
    return %c0_i32, %c0_i32_0 : i32, i32
  }
  func.func @transform_6(%arg0: i32) -> (i32, i32) {
    %c0_i32 = arith.constant 0 : i32
    %c0_i32_0 = arith.constant 0 : i32
    %c0_i32_1 = arith.constant 0 : i32
    return %c0_i32, %c0_i32_0 : i32, i32
  }
  func.func @transform_7(%arg0: i32) -> (i32, i32) {
    %c0_i32 = arith.constant 0 : i32
    %c0_i32_0 = arith.constant 0 : i32
    return %arg0, %c0_i32 : i32, i32
  }
}

</mosaic_0001>

<llo_original>
// kernel: transcriber_forward.1
$region0: #{transcriber_forward.1}
  #allocation0 [shape = 'u32[]', space=smem, size = 0x4, offset = 0x4, fixed_abs, tag = 'smem constant byte address 0x4 - core index']
  #allocation1 [shape = 'u32[72,128]{1,0:T(1,128)}', space=vmem, size = 0x9000, scoped, tag = 'internal scratch']
  %s0 = inlined_call_operand.vmem [shape: bf16[544,64], index: 0, kind: input, shape index: {}]
  %s1 = inlined_call_operand.vmem [shape: bf16[64,128], index: 1, kind: input, shape index: {}]
  %s2 = inlined_call_operand.vmem [shape: f32[1,128], index: 2, kind: input, shape index: {}]
  %s3 = inlined_call_operand.vmem [shape: bf16[128,256], index: 3, kind: input, shape index: {}]
  %s4 = inlined_call_operand.vmem [shape: f32[1,256], index: 4, kind: input, shape index: {}]
  %s5 = inlined_call_operand.vmem [shape: bf16[256,256], index: 5, kind: input, shape index: {}]
  %s6 = inlined_call_operand.vmem [shape: f32[1,256], index: 6, kind: input, shape index: {}]
  %s7 = inlined_call_operand.vmem [shape: f32[544,256], index: 7, kind: output, shape index: {}]
  %s8 = sld [smem:[#allocation0]]
  $region61: #{transcriber_forward.1} parent=0
    _
  %s10 = ssub.s32 1, %s8
  %s11 = scalar_select 0, %s10, %s8
  loop: start=0, step=1, limit=4
  $region2: #{transcriber_forward.1} parent=0 // loop_pre_header
    _
  $region3: #{transcriber_forward.1} parent=0 // loop_header
    %s13 = sphi 0, %s17
    %p14 = scmp.ge.s32.totalorder %s13, 4
    %s23 = sphi 0, %s25
    %s26 = sphi 0, %s23
    %s27 = sphi 0, %s26
    %s43 = sphi 0, %s27
    %s47 = sphi 0, %s47
    %s49 = sphi 0, %s47
    %s50 = sphi 0, %s49
    %s64 = sphi 0, %s50
    %s68 = sphi 0, %s68
    %s70 = sphi 0, %s68
    %s71 = sphi 0, %s70
    %s85 = sphi 0, %s71
    %s89 = sphi 0, %s89
    %s91 = sphi 0, %s89
    %s92 = sphi 0, %s91
    %s106 = sphi 0, %s92
    %s110 = sphi 0, %s110
    %s112 = sphi 0, %s110
    %s113 = sphi 0, %s112
    %s127 = sphi 0, %s113
    %s131 = sphi 0, %s131
    %s133 = sphi 0, %s131
    %s134 = sphi 0, %s133
    %s148 = sphi 0, %s134
    %s152 = sphi 0, %s152
    %s154 = sphi 0, %s152
    %s155 = sphi 0, %s154
    %s169 = sphi 0, %s155
    %s175 = sphi 0, %s177
    %s178 = sphi 0, %s175
    %s179 = sphi 0, %s178
    %s195 = sphi 0, %s179
  $region4: #{transcriber_forward.1} parent=0 // loop_header_branch
    %16 = sbr.rel (%p14) target = $region8
  $region5: #{transcriber_forward.1} parent=0 // loop_body
    %s18 = ssub.s32 %s13, 1
    %s19 = ssub.s32 %s13, 2
    %s20 = sadd.s32 %s13, 1
    %s21 = ssub.s32 %s13, %s20
    %p22 = scmp.eq.s32.totalorder %s21, 0
    %s24 = sadd.s32 %s23, 1
    %s25 = scalar_select %p22, %s23, %s24
    %p28 = pneg %p22
    %p29 = scmp.eq.s32.totalorder %s13, 1
    %p30 = por %p28, %p29
    %p31 = scmp.ne.s32.totalorder %s23, %s26
    %p32 = scmp.eq.s32.totalorder %s13, 0
    %p33 = por %p31, %p32
    %p34 = scmp.ne.s32.totalorder %s23, %s26
    %p35 = scmp.eq.s32.totalorder %s18, 1
    %p36 = por %p34, %p35
    %p37 = scmp.ne.s32.totalorder %s26, %s27
    %p38 = scmp.eq.s32.totalorder %s18, 0
    %p39 = por %p37, %p38
    %p40 = scmp.ne.s32.totalorder %s26, %s27
    %p41 = scmp.eq.s32.totalorder %s19, 1
    %p42 = por %p40, %p41
    %p44 = scmp.ne.s32.totalorder %s27, %s43
    %p45 = scmp.eq.s32.totalorder %s19, 0
    %p46 = por %p44, %p45
    %s48 = sadd.s32 %s47, 1
    %p51 = scmp.eq.s32.totalorder %s13, 1
    %p52 = scmp.ne.s32.totalorder %s47, %s49
    %p53 = scmp.eq.s32.totalorder %s13, 0
    %p54 = por %p52, %p53
    %p55 = scmp.ne.s32.totalorder %s47, %s49
    %p56 = scmp.eq.s32.totalorder %s18, 1
    %p57 = por %p55, %p56
    %p58 = scmp.ne.s32.totalorder %s49, %s50
    %p59 = scmp.eq.s32.totalorder %s18, 0
    %p60 = por %p58, %p59
    %p61 = scmp.ne.s32.totalorder %s49, %s50
    %p62 = scmp.eq.s32.totalorder %s19, 1
    %p63 = por %p61, %p62
    %p65 = scmp.ne.s32.totalorder %s50, %s64
    %p66 = scmp.eq.s32.totalorder %s19, 0
    %p67 = por %p65, %p66
    %s69 = sadd.s32 %s68, 1
    %p72 = scmp.eq.s32.totalorder %s13, 1
    %p73 = scmp.ne.s32.totalorder %s68, %s70
    %p74 = scmp.eq.s32.totalorder %s13, 0
    %p75 = por %p73, %p74
    %p76 = scmp.ne.s32.totalorder %s68, %s70
    %p77 = scmp.eq.s32.totalorder %s18, 1
    %p78 = por %p76, %p77
    %p79 = scmp.ne.s32.totalorder %s70, %s71
    %p80 = scmp.eq.s32.totalorder %s18, 0
    %p81 = por %p79, %p80
    %p82 = scmp.ne.s32.totalorder %s70, %s71
    %p83 = scmp.eq.s32.totalorder %s19, 1
    %p84 = por %p82, %p83
    %p86 = scmp.ne.s32.totalorder %s71, %s85
    %p87 = scmp.eq.s32.totalorder %s19, 0
    %p88 = por %p86, %p87
    %s90 = sadd.s32 %s89, 1
    %p93 = scmp.eq.s32.totalorder %s13, 1
    %p94 = scmp.ne.s32.totalorder %s89, %s91
    %p95 = scmp.eq.s32.totalorder %s13, 0
    %p96 = por %p94, %p95
    %p97 = scmp.ne.s32.totalorder %s89, %s91
    %p98 = scmp.eq.s32.totalorder %s18, 1
    %p99 = por %p97, %p98
    %p100 = scmp.ne.s32.totalorder %s91, %s92
    %p101 = scmp.eq.s32.totalorder %s18, 0
    %p102 = por %p100, %p101
    %p103 = scmp.ne.s32.totalorder %s91, %s92
    %p104 = scmp.eq.s32.totalorder %s19, 1
    %p105 = por %p103, %p104
    %p107 = scmp.ne.s32.totalorder %s92, %s106
    %p108 = scmp.eq.s32.totalorder %s19, 0
    %p109 = por %p107, %p108
    %s111 = sadd.s32 %s110, 1
    %p114 = scmp.eq.s32.totalorder %s13, 1
    %p115 = scmp.ne.s32.totalorder %s110, %s112
    %p116 = scmp.eq.s32.totalorder %s13, 0
    %p117 = por %p115, %p116
    %p118 = scmp.ne.s32.totalorder %s110, %s112
    %p119 = scmp.eq.s32.totalorder %s18, 1
    %p120 = por %p118, %p119
    %p121 = scmp.ne.s32.totalorder %s112, %s113
    %p122 = scmp.eq.s32.totalorder %s18, 0
    %p123 = por %p121, %p122
    %p124 = scmp.ne.s32.totalorder %s112, %s113
    %p125 = scmp.eq.s32.totalorder %s19, 1
    %p126 = por %p124, %p125
    %p128 = scmp.ne.s32.totalorder %s113, %s127
    %p129 = scmp.eq.s32.totalorder %s19, 0
    %p130 = por %p128, %p129
    %s132 = sadd.s32 %s131, 1
    %p135 = scmp.eq.s32.totalorder %s13, 1
    %p136 = scmp.ne.s32.totalorder %s131, %s133
    %p137 = scmp.eq.s32.totalorder %s13, 0
    %p138 = por %p136, %p137
    %p139 = scmp.ne.s32.totalorder %s131, %s133
    %p140 = scmp.eq.s32.totalorder %s18, 1
    %p141 = por %p139, %p140
    %p142 = scmp.ne.s32.totalorder %s133, %s134
    %p143 = scmp.eq.s32.totalorder %s18, 0
    %p144 = por %p142, %p143
    %p145 = scmp.ne.s32.totalorder %s133, %s134
    %p146 = scmp.eq.s32.totalorder %s19, 1
    %p147 = por %p145, %p146
    %p149 = scmp.ne.s32.totalorder %s134, %s148
    %p150 = scmp.eq.s32.totalorder %s19, 0
    %p151 = por %p149, %p150
    %s153 = sadd.s32 %s152, 1
    %p156 = scmp.eq.s32.totalorder %s13, 1
    %p157 = scmp.ne.s32.totalorder %s152, %s154
    %p158 = scmp.eq.s32.totalorder %s13, 0
    %p159 = por %p157, %p158
    %p160 = scmp.ne.s32.totalorder %s152, %s154
    %p161 = scmp.eq.s32.totalorder %s18, 1
    %p162 = por %p160, %p161
    %p163 = scmp.ne.s32.totalorder %s154, %s155
    %p164 = scmp.eq.s32.totalorder %s18, 0
    %p165 = por %p163, %p164
    %p166 = scmp.ne.s32.totalorder %s154, %s155
    %p167 = scmp.eq.s32.totalorder %s19, 1
    %p168 = por %p166, %p167
    %p170 = scmp.ne.s32.totalorder %s155, %s169
    %p171 = scmp.eq.s32.totalorder %s19, 0
    %p172 = por %p170, %p171
    %s173 = ssub.s32 %s13, %s20
    %p174 = scmp.eq.s32.totalorder %s173, 0
    %s176 = sadd.s32 %s175, 1
    %s177 = scalar_select %p174, %s175, %s176
    %p180 = pneg %p174
    %p181 = scmp.eq.s32.totalorder %s13, 1
    %p182 = por %p180, %p181
    %p183 = scmp.ne.s32.totalorder %s175, %s178
    %p184 = scmp.eq.s32.totalorder %s13, 0
    %p185 = por %p183, %p184
    %p186 = scmp.ne.s32.totalorder %s175, %s178
    %p187 = scmp.eq.s32.totalorder %s18, 1
    %p188 = por %p186, %p187
    %p189 = scmp.ne.s32.totalorder %s178, %s179
    %p190 = scmp.eq.s32.totalorder %s18, 0
    %p191 = por %p189, %p190
    %p192 = scmp.ne.s32.totalorder %s178, %s179
    %p193 = scmp.eq.s32.totalorder %s19, 1
    %p194 = por %p192, %p193
    %p196 = scmp.ne.s32.totalorder %s179, %s195
    %p197 = scmp.eq.s32.totalorder %s19, 0
    %p198 = por %p196, %p197
    %p199 = scmp.le.s32.totalorder 1, %s13
    %p200 = scmp.lt.s32.totalorder %s13, 3
    %p201 = pnand %p199, %p200
    %p202 = pneg %p201
    // Predicated region
    $region9: #{transcriber_forward.1} parent=5 // pred_check
      _
    $region10: #{transcriber_forward.1} parent=5 // pred_check_branch
      %204 = sbr.rel (%p201) target = $region12
    $region11: #{transcriber_forward.1} parent=5 // pred_region
      %s205 = ssub.s32 %s13, 1
      // Predicated region
      $region13: #{transcriber_forward.1} parent=11 // pred_check
        %p206 = pneg %p60
      $region14: #{transcriber_forward.1} parent=11 // pred_check_branch
        %208 = sbr.rel (%p206) target = $region16
      $region15: #{transcriber_forward.1} parent=11 // pred_region
        _
      $region16: #{transcriber_forward.1} parent=11 // pred_fallthru
        _
      // Predicated region
      $region17: #{transcriber_forward.1} parent=11 // pred_check
        %p209 = pneg %p81
      $region18: #{transcriber_forward.1} parent=11 // pred_check_branch
        %211 = sbr.rel (%p209) target = $region20
      $region19: #{transcriber_forward.1} parent=11 // pred_region
        _
      $region20: #{transcriber_forward.1} parent=11 // pred_fallthru
        _
      // Predicated region
      $region21: #{transcriber_forward.1} parent=11 // pred_check
        %p212 = pneg %p102
      $region22: #{transcriber_forward.1} parent=11 // pred_check_branch
        %214 = sbr.rel (%p212) target = $region24
      $region23: #{transcriber_forward.1} parent=11 // pred_region
        _
      $region24: #{transcriber_forward.1} parent=11 // pred_fallthru
        _
      // Predicated region
      $region25: #{transcriber_forward.1} parent=11 // pred_check
        %p215 = pneg %p123
      $region26: #{transcriber_forward.1} parent=11 // pred_check_branch
        %217 = sbr.rel (%p215) target = $region28
      $region27: #{transcriber_forward.1} parent=11 // pred_region
        _
      $region28: #{transcriber_forward.1} parent=11 // pred_fallthru
        _
      // Predicated region
      $region29: #{transcriber_forward.1} parent=11 // pred_check
        %p218 = pneg %p144
      $region30: #{transcriber_forward.1} parent=11 // pred_check_branch
        %220 = sbr.rel (%p218) target = $region32
      $region31: #{transcriber_forward.1} parent=11 // pred_region
        _
      $region32: #{transcriber_forward.1} parent=11 // pred_fallthru
        _
      // Predicated region
      $region33: #{transcriber_forward.1} parent=11 // pred_check
        %p221 = pneg %p165
      $region34: #{transcriber_forward.1} parent=11 // pred_check_branch
        %223 = sbr.rel (%p221) target = $region36
      $region35: #{transcriber_forward.1} parent=11 // pred_region
        _
      $region36: #{transcriber_forward.1} parent=11 // pred_fallthru
        _
    $region12: #{transcriber_forward.1} parent=5 // pred_fallthru
      _
    %p224 = scmp.lt.s32.totalorder %s13, 2
    // Predicated region
    $region37: #{transcriber_forward.1} parent=5 // pred_check
      %p225 = pneg %p224
    $region38: #{transcriber_forward.1} parent=5 // pred_check_branch
      %227 = sbr.rel (%p225) target = $region40
    $region39: #{transcriber_forward.1} parent=5 // pred_region
      // Predicated region
      $region41: #{transcriber_forward.1} parent=39 // pred_check
        %p228 = pneg %p33
      $region42: #{transcriber_forward.1} parent=39 // pred_check_branch
        %230 = sbr.rel (%p228) target = $region44
      $region43: #{transcriber_forward.1} parent=39 // pred_region
        %s231 = smul.u32 34, %s13
        %p232 = scmp.lt.s32.totalorder %s231, 67
        %s233 = scalar_select %p232, %s231, 67
        %s234 = smul.addr %s233, 4
        %s235 = scalar_lea.vmem %s0, %s234
        %s236 = smul.u32 34, %s13
      $region44: #{transcriber_forward.1} parent=39 // pred_fallthru
        _
    $region40: #{transcriber_forward.1} parent=5 // pred_fallthru
      _
    %p237 = scmp.le.s32.totalorder 1, %s13
    %p238 = scmp.lt.s32.totalorder %s13, 3
    %p239 = pnand %p237, %p238
    %p240 = pneg %p239
    // Predicated region
    $region45: #{transcriber_forward.1} parent=5 // pred_check
      _
    $region46: #{transcriber_forward.1} parent=5 // pred_check_branch
      %242 = sbr.rel (%p239) target = $region48
    $region47: #{transcriber_forward.1} parent=5 // pred_region
      %s243 = ssub.s32 %s13, 1
      %s244 = smul.u32 34, %s18
      %p245 = scmp.lt.s32.totalorder %s244, 67
      %s246 = scalar_select %p245, %s244, 67
      %s247 = smul.addr %s246, 4
      %s248 = scalar_lea.vmem %s0, %s247
      %p249 = pneg %p39
      %p250 = pneg %p36
      %p251 = pneg %p60
      %p252 = pneg %p57
      %p253 = pneg %p81
      %p254 = pneg %p78
      %p255 = pneg %p102
      %p256 = pneg %p99
      %p257 = pneg %p123
      %p258 = pneg %p120
      %p259 = pneg %p144
      %p260 = pneg %p141
      %p261 = pneg %p165
      %p262 = pneg %p162
      %p263 = pneg %p191
      %p264 = pneg %p188
      %s265 = smul.u32 34, %s18
      %p266 = scmp.lt.s32.totalorder %s265, 67
      %s267 = scalar_select %p266, %s265, 67
      %s268 = smul.addr %s267, 2
      %s269 = smul.addr %s268, 8
      %s270 = scalar_lea.vmem %s7, %s269
      %s271 = smul.u32 34, %s18
      %p272 = scmp.lt.s32.totalorder %s271, 67
      %s273 = scalar_select %p272, %s271, 67
      %s274 = smul.addr %s273, 4
      %s275 = scalar_lea.vmem %s0, %s274
      %s276 = smul.u32 34, %s18
      %s277 = smul.u32 34, %s18
      %p278 = scmp.lt.s32.totalorder %s277, 67
      %s279 = scalar_select %p278, %s277, 67
      %s280 = smul.addr %s279, 2
      %s281 = smul.addr %s280, 8
      %s282 = scalar_lea.vmem %s7, %s281
      %s283 = smul.u32 34, %s18
      %v285 = vld [vmem:[%s275] sm:$0xf]
      %v286 = vld [vmem:[%s275 + $0x4] sm:$0xf]
      %v287 = vld [vmem:[%s275 + $0x8] sm:$0xf]
      %v288 = vld [vmem:[%s275 + $0xc] sm:$0xf]
      %v289 = vld [vmem:[%s275 + $0x10] sm:$0xf]
      %v290 = vld [vmem:[%s275 + $0x14] sm:$0xf]
      %v291 = vld [vmem:[%s275 + $0x18] sm:$0xf]
      %v292 = vld [vmem:[%s275 + $0x1c] sm:$0xf]
      %v293 = vld [vmem:[%s275 + $0x20] sm:$0xf]
      %v294 = vld [vmem:[%s275 + $0x24] sm:$0xf]
      %v295 = vld [vmem:[%s275 + $0x28] sm:$0xf]
      %v296 = vld [vmem:[%s275 + $0x2c] sm:$0xf]
      %v297 = vld [vmem:[%s275 + $0x30] sm:$0xf]
      %v298 = vld [vmem:[%s275 + $0x34] sm:$0xf]
      %v299 = vld [vmem:[%s275 + $0x38] sm:$0xf]
      %v300 = vld [vmem:[%s275 + $0x3c] sm:$0xf]
      %v301 = vld [vmem:[%s275 + $0x40] sm:$0xf]
      %v302 = vld [vmem:[%s275 + $0x44] sm:$0xf]
      %v303 = vld [vmem:[%s275 + $0x48] sm:$0xf]
      %v304 = vld [vmem:[%s275 + $0x4c] sm:$0xf]
      %v305 = vld [vmem:[%s275 + $0x50] sm:$0xf]
      %v306 = vld [vmem:[%s275 + $0x54] sm:$0xf]
      %v307 = vld [vmem:[%s275 + $0x58] sm:$0xf]
      %v308 = vld [vmem:[%s275 + $0x5c] sm:$0xf]
      %v309 = vld [vmem:[%s275 + $0x60] sm:$0xf]
      %v310 = vld [vmem:[%s275 + $0x64] sm:$0xf]
      %v311 = vld [vmem:[%s275 + $0x68] sm:$0xf]
      %v312 = vld [vmem:[%s275 + $0x6c] sm:$0xf]
      %v313 = vld [vmem:[%s275 + $0x70] sm:$0xf]
      %v314 = vld [vmem:[%s275 + $0x74] sm:$0xf]
      %v315 = vld [vmem:[%s275 + $0x78] sm:$0xf]
      %v316 = vld [vmem:[%s275 + $0x7c] sm:$0xf]
      %v317 = vld [vmem:[%s275 + $0x80] sm:$0xf]
      %v318 = vld [vmem:[%s275 + $0x84] sm:$0xf]
      %v319 = vld [vmem:[%s1] sm:$0xf]
      %v320 = vld [vmem:[%s1 + $0x4] sm:$0xf]
      %v321 = vld [vmem:[%s1 + $0x8] sm:$0xf]
      %v322 = vld [vmem:[%s1 + $0xc] sm:$0xf]
      %v323 = vld [vmem:[%s1 + $0x10] sm:$0xf]
      %v324 = vld [vmem:[%s1 + $0x14] sm:$0xf]
      %v325 = vld [vmem:[%s1 + $0x18] sm:$0xf]
      %v326 = vld [vmem:[%s1 + $0x1c] sm:$0xf]
      %v327 = vld [vmem:[%s2] sm:$0x1]
      %v329 = vperm.slane %v327, 0
      %v365 = vunpack.c.l.b16 %v285
      %v366 = vunpack.c.l.b16 %v286
      %v367 = vunpack.c.l.b16 %v287
      %v368 = vunpack.c.l.b16 %v288
      %v369 = vunpack.c.l.b16 %v289
      %v370 = vunpack.c.l.b16 %v290
      %v371 = vunpack.c.l.b16 %v291
      %v372 = vunpack.c.l.b16 %v292
      %v373 = vunpack.c.l.b16 %v293
      %v374 = vunpack.c.l.b16 %v294
      %v375 = vunpack.c.l.b16 %v295
      %v376 = vunpack.c.l.b16 %v296
      %v377 = vunpack.c.l.b16 %v297
      %v378 = vunpack.c.l.b16 %v298
      %v379 = vunpack.c.l.b16 %v299
      %v380 = vunpack.c.l.b16 %v300
      %v381 = vunpack.c.l.b16 %v301
      %v382 = vunpack.c.l.b16 %v302
      %v383 = vunpack.c.l.b16 %v303
      %v384 = vunpack.c.l.b16 %v304
      %v385 = vunpack.c.l.b16 %v305
      %v386 = vunpack.c.l.b16 %v306
      %v387 = vunpack.c.l.b16 %v307
      %v388 = vunpack.c.l.b16 %v308
      %v389 = vunpack.c.l.b16 %v309
      %v390 = vunpack.c.l.b16 %v310
      %v391 = vunpack.c.l.b16 %v311
      %v392 = vunpack.c.l.b16 %v312
      %v393 = vunpack.c.l.b16 %v313
      %v394 = vunpack.c.l.b16 %v314
      %v395 = vunpack.c.l.b16 %v315
      %v396 = vunpack.c.l.b16 %v316
      %v397 = vunpack.c.l.b16 %v317
      %v398 = vunpack.c.l.b16 %v318
      %v399 = vpack.c.b16 %v366, %v365
      %v400 = vpack.c.b16 %v368, %v367
      %v401 = vpack.c.b16 %v370, %v369
      %v402 = vpack.c.b16 %v372, %v371
      %v403 = vpack.c.b16 %v374, %v373
      %v404 = vpack.c.b16 %v376, %v375
      %v405 = vpack.c.b16 %v378, %v377
      %v406 = vpack.c.b16 %v380, %v379
      %v407 = vpack.c.b16 %v382, %v381
      %v408 = vpack.c.b16 %v384, %v383
      %v409 = vpack.c.b16 %v386, %v385
      %v410 = vpack.c.b16 %v388, %v387
      %v411 = vpack.c.b16 %v390, %v389
      %v412 = vpack.c.b16 %v392, %v391
      %v413 = vpack.c.b16 %v394, %v393
      %v414 = vpack.c.b16 %v396, %v395
      %v415 = vpack.c.b16 %v398, %v397
      %v424 = vunpack.c.l.b16 %v319
      %v425 = vunpack.c.l.b16 %v320
      %v426 = vunpack.c.l.b16 %v321
      %v427 = vunpack.c.l.b16 %v322
      %v428 = vunpack.c.l.b16 %v323
      %v429 = vunpack.c.l.b16 %v324
      %v430 = vunpack.c.l.b16 %v325
      %v431 = vunpack.c.l.b16 %v326
      %v432 = vpack.c.b16 %v425, %v424
      %v433 = vpack.c.b16 %v427, %v426
      %v434 = vpack.c.b16 %v429, %v428
      %v435 = vpack.c.b16 %v431, %v430
      %vm440 = vcmask 523264
      %v442 = vsel %vm440, %v399, 0
      %v445 = vsel %vm440, %v400, 0
      %v448 = vsel %vm440, %v401, 0
      %v451 = vsel %vm440, %v402, 0
      %v454 = vsel %vm440, %v403, 0
      %v457 = vsel %vm440, %v404, 0
      %v460 = vsel %vm440, %v405, 0
      %v463 = vsel %vm440, %v406, 0
      %v466 = vsel %vm440, %v407, 0
      %v469 = vsel %vm440, %v408, 0
      %v472 = vsel %vm440, %v409, 0
      %v475 = vsel %vm440, %v410, 0
      %v478 = vsel %vm440, %v411, 0
      %v481 = vsel %vm440, %v412, 0
      %v484 = vsel %vm440, %v413, 0
      %v487 = vsel %vm440, %v414, 0
      %v490 = vsel %vm440, %v415, 0
      %492 = vmatpush.bf16.msra.mxu0 0
      %493 = vmatpush.bf16.msra.mxu0 0
      %494 = vmatpush.bf16.msra.mxu0 0
      %495 = vmatpush.bf16.msra.mxu0 0
      %496 = vmatpush.bf16.msra.mxu0 %v435
      %497 = vmatpush.bf16.msra.mxu0 %v434
      %498 = vmatpush.bf16.msra.mxu0 %v433
      %499 = vmatpush.bf16.msra.mxu0 %v432
      %500 = vmatmul.bf16.gmra.mxu0 %v442
      %v501 = vpop.f32.mrf.mxu0
      %v502 = vadd.f32 %v329, %v501
      %v503 = vpop.f32.mrf.mxu0
      %v504 = vadd.f32 %v329, %v503
      %505 = vmatmul.bf16.gmra.mxu0 %v445
      %v506 = vpop.f32.mrf.mxu0
      %v507 = vadd.f32 %v329, %v506
      %v508 = vpop.f32.mrf.mxu0
      %v509 = vadd.f32 %v329, %v508
      %510 = vmatmul.bf16.gmra.mxu0 %v448
      %v511 = vpop.f32.mrf.mxu0
      %v512 = vadd.f32 %v329, %v511
      %v513 = vpop.f32.mrf.mxu0
      %v514 = vadd.f32 %v329, %v513
      %515 = vmatmul.bf16.gmra.mxu0 %v451
      %v516 = vpop.f32.mrf.mxu0
      %v517 = vadd.f32 %v329, %v516
      %v518 = vpop.f32.mrf.mxu0
      %v519 = vadd.f32 %v329, %v518
      %520 = vmatmul.bf16.gmra.mxu0 %v454
      %v521 = vpop.f32.mrf.mxu0
      %v522 = vadd.f32 %v329, %v521
      %v523 = vpop.f32.mrf.mxu0
      %v524 = vadd.f32 %v329, %v523
      %525 = vmatmul.bf16.gmra.mxu0 %v457
      %v526 = vpop.f32.mrf.mxu0
      %v527 = vadd.f32 %v329, %v526
      %v528 = vpop.f32.mrf.mxu0
      %v529 = vadd.f32 %v329, %v528
      %530 = vmatmul.bf16.gmra.mxu0 %v460
      %v531 = vpop.f32.mrf.mxu0
      %v532 = vadd.f32 %v329, %v531
      %v533 = vpop.f32.mrf.mxu0
      %v534 = vadd.f32 %v329, %v533
      %535 = vmatmul.bf16.gmra.mxu0 %v463
      %v536 = vpop.f32.mrf.mxu0
      %v537 = vadd.f32 %v329, %v536
      %v538 = vpop.f32.mrf.mxu0
      %v539 = vadd.f32 %v329, %v538
      %540 = vmatmul.bf16.gmra.mxu0 %v466
      %v541 = vpop.f32.mrf.mxu0
      %v542 = vadd.f32 %v329, %v541
      %v543 = vpop.f32.mrf.mxu0
      %v544 = vadd.f32 %v329, %v543
      %545 = vmatmul.bf16.gmra.mxu0 %v469
      %v546 = vpop.f32.mrf.mxu0
      %v547 = vadd.f32 %v329, %v546
      %v548 = vpop.f32.mrf.mxu0
      %v549 = vadd.f32 %v329, %v548
      %550 = vmatmul.bf16.gmra.mxu0 %v472
      %v551 = vpop.f32.mrf.mxu0
      %v552 = vadd.f32 %v329, %v551
      %v553 = vpop.f32.mrf.mxu0
      %v554 = vadd.f32 %v329, %v553
      %555 = vmatmul.bf16.gmra.mxu0 %v475
      %v556 = vpop.f32.mrf.mxu0
      %v557 = vadd.f32 %v329, %v556
      %v558 = vpop.f32.mrf.mxu0
      %v559 = vadd.f32 %v329, %v558
      %560 = vmatmul.bf16.gmra.mxu0 %v478
      %v561 = vpop.f32.mrf.mxu0
      %v562 = vadd.f32 %v329, %v561
      %v563 = vpop.f32.mrf.mxu0
      %v564 = vadd.f32 %v329, %v563
      %565 = vmatmul.bf16.gmra.mxu0 %v481
      %v566 = vpop.f32.mrf.mxu0
      %v567 = vadd.f32 %v329, %v566
      %v568 = vpop.f32.mrf.mxu0
      %v569 = vadd.f32 %v329, %v568
      %570 = vmatmul.bf16.gmra.mxu0 %v484
      %v571 = vpop.f32.mrf.mxu0
      %v572 = vadd.f32 %v329, %v571
      %v573 = vpop.f32.mrf.mxu0
      %v574 = vadd.f32 %v329, %v573
      %575 = vmatmul.bf16.gmra.mxu0 %v487
      %v576 = vpop.f32.mrf.mxu0
      %v577 = vadd.f32 %v329, %v576
      %v578 = vpop.f32.mrf.mxu0
      %v579 = vadd.f32 %v329, %v578
      %580 = vmatmul.bf16.gmra.mxu0 %v490
      %v581 = vpop.f32.mrf.mxu0
      %v582 = vadd.f32 %v329, %v581
      %v583 = vpop.f32.mrf.mxu0
      %v584 = vadd.f32 %v329, %v583
      %585 = vdwg.mxu0
      %v586 = vmax.f32 %v502, 0.0
      %v587 = vmax.f32 %v504, 0.0
      %v588 = vmax.f32 %v507, 0.0
      %v589 = vmax.f32 %v509, 0.0
      %v590 = vmax.f32 %v512, 0.0
      %v591 = vmax.f32 %v514, 0.0
      %v592 = vmax.f32 %v517, 0.0
      %v593 = vmax.f32 %v519, 0.0
      %v594 = vmax.f32 %v522, 0.0
      %v595 = vmax.f32 %v524, 0.0
      %v596 = vmax.f32 %v527, 0.0
      %v597 = vmax.f32 %v529, 0.0
      %v598 = vmax.f32 %v532, 0.0
      %v599 = vmax.f32 %v534, 0.0
      %v600 = vmax.f32 %v537, 0.0
      %v601 = vmax.f32 %v539, 0.0
      %v602 = vmax.f32 %v542, 0.0
      %v603 = vmax.f32 %v544, 0.0
      %v604 = vmax.f32 %v547, 0.0
      %v605 = vmax.f32 %v549, 0.0
      %v606 = vmax.f32 %v552, 0.0
      %v607 = vmax.f32 %v554, 0.0
      %v608 = vmax.f32 %v557, 0.0
      %v609 = vmax.f32 %v559, 0.0
      %v610 = vmax.f32 %v562, 0.0
      %v611 = vmax.f32 %v564, 0.0
      %v612 = vmax.f32 %v567, 0.0
      %v613 = vmax.f32 %v569, 0.0
      %v614 = vmax.f32 %v572, 0.0
      %v615 = vmax.f32 %v574, 0.0
      %v616 = vmax.f32 %v577, 0.0
      %v617 = vmax.f32 %v579, 0.0
      %v618 = vmax.f32 %v582, 0.0
      %v619 = vmax.f32 %v584, 0.0
      %v620 = vpack.c.bf16 %v587, %v586
      %v621 = vpack.c.bf16 %v589, %v588
      %v622 = vpack.c.bf16 %v591, %v590
      %v623 = vpack.c.bf16 %v593, %v592
      %v624 = vpack.c.bf16 %v595, %v594
      %v625 = vpack.c.bf16 %v597, %v596
      %v626 = vpack.c.bf16 %v599, %v598
      %v627 = vpack.c.bf16 %v601, %v600
      %v628 = vpack.c.bf16 %v603, %v602
      %v629 = vpack.c.bf16 %v605, %v604
      %v630 = vpack.c.bf16 %v607, %v606
      %v631 = vpack.c.bf16 %v609, %v608
      %v632 = vpack.c.bf16 %v611, %v610
      %v633 = vpack.c.bf16 %v613, %v612
      %v634 = vpack.c.bf16 %v615, %v614
      %v635 = vpack.c.bf16 %v617, %v616
      %v636 = vpack.c.bf16 %v619, %v618
      %v637 = vld [vmem:[%s3] sm:$0xff]
      %v638 = vld [vmem:[%s3 + $0x8] sm:$0xff]
      %v639 = vld [vmem:[%s3 + $0x10] sm:$0xff]
      %v640 = vld [vmem:[%s3 + $0x18] sm:$0xff]
      %v641 = vld [vmem:[%s3 + $0x20] sm:$0xff]
      %v642 = vld [vmem:[%s3 + $0x28] sm:$0xff]
      %v643 = vld [vmem:[%s3 + $0x30] sm:$0xff]
      %v644 = vld [vmem:[%s3 + $0x38] sm:$0xff]
      %v645 = vld [vmem:[%s3 + $0x40] sm:$0xff]
      %v646 = vld [vmem:[%s3 + $0x48] sm:$0xff]
      %v647 = vld [vmem:[%s3 + $0x50] sm:$0xff]
      %v648 = vld [vmem:[%s3 + $0x58] sm:$0xff]
      %v649 = vld [vmem:[%s3 + $0x60] sm:$0xff]
      %v650 = vld [vmem:[%s3 + $0x68] sm:$0xff]
      %v651 = vld [vmem:[%s3 + $0x70] sm:$0xff]
      %v652 = vld [vmem:[%s3 + $0x78] sm:$0xff]
      %v653 = vld [vmem:[%s4] sm:$0x3]
      %v655 = vperm.slane %v653, 0
      %v656 = vperm.slane %v653, 1
      %v675 = vunpack.c.l.b16 %v637
      %v676 = vunpack.c.h.b16 %v637
      %v677 = vunpack.c.l.b16 %v638
      %v678 = vunpack.c.h.b16 %v638
      %v679 = vunpack.c.l.b16 %v639
      %v680 = vunpack.c.h.b16 %v639
      %v681 = vunpack.c.l.b16 %v640
      %v682 = vunpack.c.h.b16 %v640
      %v683 = vunpack.c.l.b16 %v641
      %v684 = vunpack.c.h.b16 %v641
      %v685 = vunpack.c.l.b16 %v642
      %v686 = vunpack.c.h.b16 %v642
      %v687 = vunpack.c.l.b16 %v643
      %v688 = vunpack.c.h.b16 %v643
      %v689 = vunpack.c.l.b16 %v644
      %v690 = vunpack.c.h.b16 %v644
      %v691 = vunpack.c.l.b16 %v645
      %v692 = vunpack.c.h.b16 %v645
      %v693 = vunpack.c.l.b16 %v646
      %v694 = vunpack.c.h.b16 %v646
      %v695 = vunpack.c.l.b16 %v647
      %v696 = vunpack.c.h.b16 %v647
      %v697 = vunpack.c.l.b16 %v648
      %v698 = vunpack.c.h.b16 %v648
      %v699 = vunpack.c.l.b16 %v649
      %v700 = vunpack.c.h.b16 %v649
      %v701 = vunpack.c.l.b16 %v650
      %v702 = vunpack.c.h.b16 %v650
      %v703 = vunpack.c.l.b16 %v651
      %v704 = vunpack.c.h.b16 %v651
      %v705 = vunpack.c.l.b16 %v652
      %v706 = vunpack.c.h.b16 %v652
      %v707 = vpack.c.b16 %v677, %v675
      %v708 = vpack.c.b16 %v678, %v676
      %v709 = vpack.c.b16 %v681, %v679
      %v710 = vpack.c.b16 %v682, %v680
      %v711 = vpack.c.b16 %v685, %v683
      %v712 = vpack.c.b16 %v686, %v684
      %v713 = vpack.c.b16 %v689, %v687
      %v714 = vpack.c.b16 %v690, %v688
      %v715 = vpack.c.b16 %v693, %v691
      %v716 = vpack.c.b16 %v694, %v692
      %v717 = vpack.c.b16 %v697, %v695
      %v718 = vpack.c.b16 %v698, %v696
      %v719 = vpack.c.b16 %v701, %v699
      %v720 = vpack.c.b16 %v702, %v700
      %v721 = vpack.c.b16 %v705, %v703
      %v722 = vpack.c.b16 %v706, %v704
      %739 = vmatpush.bf16.msra.mxu0 %v721
      %740 = vmatpush.bf16.msra.mxu0 %v719
      %741 = vmatpush.bf16.msra.mxu0 %v717
      %742 = vmatpush.bf16.msra.mxu0 %v715
      %743 = vmatpush.bf16.msra.mxu0 %v713
      %744 = vmatpush.bf16.msra.mxu0 %v711
      %745 = vmatpush.bf16.msra.mxu0 %v709
      %746 = vmatpush.bf16.msra.mxu0 %v707
      %747 = vmatmul.bf16.gmra.mxu0 %v620
      %v748 = vpop.f32.mrf.mxu0
      %v749 = vadd.f32 %v655, %v748
      %v750 = vpop.f32.mrf.mxu0
      %v751 = vadd.f32 %v655, %v750
      %752 = vmatmul.bf16.gmra.mxu0 %v621
      %v753 = vpop.f32.mrf.mxu0
      %v754 = vadd.f32 %v655, %v753
      %v755 = vpop.f32.mrf.mxu0
      %v756 = vadd.f32 %v655, %v755
      %757 = vmatmul.bf16.gmra.mxu0 %v622
      %v758 = vpop.f32.mrf.mxu0
      %v759 = vadd.f32 %v655, %v758
      %v760 = vpop.f32.mrf.mxu0
      %v761 = vadd.f32 %v655, %v760
      %762 = vmatmul.bf16.gmra.mxu0 %v623
      %v763 = vpop.f32.mrf.mxu0
      %v764 = vadd.f32 %v655, %v763
      %v765 = vpop.f32.mrf.mxu0
      %v766 = vadd.f32 %v655, %v765
      %767 = vmatmul.bf16.gmra.mxu0 %v624
      %v768 = vpop.f32.mrf.mxu0
      %v769 = vadd.f32 %v655, %v768
      %v770 = vpop.f32.mrf.mxu0
      %v771 = vadd.f32 %v655, %v770
      %772 = vmatmul.bf16.gmra.mxu0 %v625
      %v773 = vpop.f32.mrf.mxu0
      %v774 = vadd.f32 %v655, %v773
      %v775 = vpop.f32.mrf.mxu0
      %v776 = vadd.f32 %v655, %v775
      %777 = vmatmul.bf16.gmra.mxu0 %v626
      %v778 = vpop.f32.mrf.mxu0
      %v779 = vadd.f32 %v655, %v778
      %v780 = vpop.f32.mrf.mxu0
      %v781 = vadd.f32 %v655, %v780
      %782 = vmatmul.bf16.gmra.mxu0 %v627
      %v783 = vpop.f32.mrf.mxu0
      %v784 = vadd.f32 %v655, %v783
      %v785 = vpop.f32.mrf.mxu0
      %v786 = vadd.f32 %v655, %v785
      %787 = vmatmul.bf16.gmra.mxu0 %v628
      %v788 = vpop.f32.mrf.mxu0
      %v789 = vadd.f32 %v655, %v788
      %v790 = vpop.f32.mrf.mxu0
      %v791 = vadd.f32 %v655, %v790
      %792 = vmatmul.bf16.gmra.mxu0 %v629
      %v793 = vpop.f32.mrf.mxu0
      %v794 = vadd.f32 %v655, %v793
      %v795 = vpop.f32.mrf.mxu0
      %v796 = vadd.f32 %v655, %v795
      %797 = vmatmul.bf16.gmra.mxu0 %v630
      %v798 = vpop.f32.mrf.mxu0
      %v799 = vadd.f32 %v655, %v798
      %v800 = vpop.f32.mrf.mxu0
      %v801 = vadd.f32 %v655, %v800
      %802 = vmatmul.bf16.gmra.mxu0 %v631
      %v803 = vpop.f32.mrf.mxu0
      %v804 = vadd.f32 %v655, %v803
      %v805 = vpop.f32.mrf.mxu0
      %v806 = vadd.f32 %v655, %v805
      %807 = vmatmul.bf16.gmra.mxu0 %v632
      %v808 = vpop.f32.mrf.mxu0
      %v809 = vadd.f32 %v655, %v808
      %v810 = vpop.f32.mrf.mxu0
      %v811 = vadd.f32 %v655, %v810
      %812 = vmatmul.bf16.gmra.mxu0 %v633
      %v813 = vpop.f32.mrf.mxu0
      %v814 = vadd.f32 %v655, %v813
      %v815 = vpop.f32.mrf.mxu0
      %v816 = vadd.f32 %v655, %v815
      %817 = vmatmul.bf16.gmra.mxu0 %v634
      %v818 = vpop.f32.mrf.mxu0
      %v819 = vadd.f32 %v655, %v818
      %v820 = vpop.f32.mrf.mxu0
      %v821 = vadd.f32 %v655, %v820
      %822 = vmatmul.bf16.gmra.mxu0 %v635
      %v823 = vpop.f32.mrf.mxu0
      %v824 = vadd.f32 %v655, %v823
      %v825 = vpop.f32.mrf.mxu0
      %v826 = vadd.f32 %v655, %v825
      %827 = vmatmul.bf16.gmra.mxu0 %v636
      %v828 = vpop.f32.mrf.mxu0
      %v829 = vadd.f32 %v655, %v828
      %v830 = vpop.f32.mrf.mxu0
      %v831 = vadd.f32 %v655, %v830
      %832 = vdwg.mxu0
      %833 = vmatpush.bf16.msra.mxu0 %v722
      %834 = vmatpush.bf16.msra.mxu0 %v720
      %835 = vmatpush.bf16.msra.mxu0 %v718
      %836 = vmatpush.bf16.msra.mxu0 %v716
      %837 = vmatpush.bf16.msra.mxu0 %v714
      %838 = vmatpush.bf16.msra.mxu0 %v712
      %839 = vmatpush.bf16.msra.mxu0 %v710
      %840 = vmatpush.bf16.msra.mxu0 %v708
      %841 = vmatmul.bf16.gmra.mxu0 %v620
      %v842 = vpop.f32.mrf.mxu0
      %v843 = vadd.f32 %v656, %v842
      %v844 = vpop.f32.mrf.mxu0
      %v845 = vadd.f32 %v656, %v844
      %846 = vmatmul.bf16.gmra.mxu0 %v621
      %v847 = vpop.f32.mrf.mxu0
      %v848 = vadd.f32 %v656, %v847
      %v849 = vpop.f32.mrf.mxu0
      %v850 = vadd.f32 %v656, %v849
      %851 = vmatmul.bf16.gmra.mxu0 %v622
      %v852 = vpop.f32.mrf.mxu0
      %v853 = vadd.f32 %v656, %v852
      %v854 = vpop.f32.mrf.mxu0
      %v855 = vadd.f32 %v656, %v854
      %856 = vmatmul.bf16.gmra.mxu0 %v623
      %v857 = vpop.f32.mrf.mxu0
      %v858 = vadd.f32 %v656, %v857
      %v859 = vpop.f32.mrf.mxu0
      %v860 = vadd.f32 %v656, %v859
      %861 = vmatmul.bf16.gmra.mxu0 %v624
      %v862 = vpop.f32.mrf.mxu0
      %v863 = vadd.f32 %v656, %v862
      %v864 = vpop.f32.mrf.mxu0
      %v865 = vadd.f32 %v656, %v864
      %866 = vmatmul.bf16.gmra.mxu0 %v625
      %v867 = vpop.f32.mrf.mxu0
      %v868 = vadd.f32 %v656, %v867
      %v869 = vpop.f32.mrf.mxu0
      %v870 = vadd.f32 %v656, %v869
      %871 = vmatmul.bf16.gmra.mxu0 %v626
      %v872 = vpop.f32.mrf.mxu0
      %v873 = vadd.f32 %v656, %v872
      %v874 = vpop.f32.mrf.mxu0
      %v875 = vadd.f32 %v656, %v874
      %876 = vmatmul.bf16.gmra.mxu0 %v627
      %v877 = vpop.f32.mrf.mxu0
      %v878 = vadd.f32 %v656, %v877
      %v879 = vpop.f32.mrf.mxu0
      %v880 = vadd.f32 %v656, %v879
      %881 = vmatmul.bf16.gmra.mxu0 %v628
      %v882 = vpop.f32.mrf.mxu0
      %v883 = vadd.f32 %v656, %v882
      %v884 = vpop.f32.mrf.mxu0
      %v885 = vadd.f32 %v656, %v884
      %886 = vmatmul.bf16.gmra.mxu0 %v629
      %v887 = vpop.f32.mrf.mxu0
      %v888 = vadd.f32 %v656, %v887
      %v889 = vpop.f32.mrf.mxu0
      %v890 = vadd.f32 %v656, %v889
      %891 = vmatmul.bf16.gmra.mxu0 %v630
      %v892 = vpop.f32.mrf.mxu0
      %v893 = vadd.f32 %v656, %v892
      %v894 = vpop.f32.mrf.mxu0
      %v895 = vadd.f32 %v656, %v894
      %896 = vmatmul.bf16.gmra.mxu0 %v631
      %v897 = vpop.f32.mrf.mxu0
      %v898 = vadd.f32 %v656, %v897
      %v899 = vpop.f32.mrf.mxu0
      %v900 = vadd.f32 %v656, %v899
      %901 = vmatmul.bf16.gmra.mxu0 %v632
      %v902 = vpop.f32.mrf.mxu0
      %v903 = vadd.f32 %v656, %v902
      %v904 = vpop.f32.mrf.mxu0
      %v905 = vadd.f32 %v656, %v904
      %906 = vmatmul.bf16.gmra.mxu0 %v633
      %v907 = vpop.f32.mrf.mxu0
      %v908 = vadd.f32 %v656, %v907
      %v909 = vpop.f32.mrf.mxu0
      %v910 = vadd.f32 %v656, %v909
      %911 = vmatmul.bf16.gmra.mxu0 %v634
      %v912 = vpop.f32.mrf.mxu0
      %v913 = vadd.f32 %v656, %v912
      %v914 = vpop.f32.mrf.mxu0
      %v915 = vadd.f32 %v656, %v914
      %916 = vmatmul.bf16.gmra.mxu0 %v635
      %v917 = vpop.f32.mrf.mxu0
      %v918 = vadd.f32 %v656, %v917
      %v919 = vpop.f32.mrf.mxu0
      %v920 = vadd.f32 %v656, %v919
      %921 = vmatmul.bf16.gmra.mxu0 %v636
      %v922 = vpop.f32.mrf.mxu0
      %v923 = vadd.f32 %v656, %v922
      %v924 = vpop.f32.mrf.mxu0
      %v925 = vadd.f32 %v656, %v924
      %926 = vdwg.mxu0
      %v927 = vmax.f32 %v749, 0.0
      %v928 = vmax.f32 %v843, 0.0
      %v929 = vmax.f32 %v751, 0.0
      %v930 = vmax.f32 %v845, 0.0
      %v931 = vmax.f32 %v754, 0.0
      %v932 = vmax.f32 %v848, 0.0
      %v933 = vmax.f32 %v756, 0.0
      %v934 = vmax.f32 %v850, 0.0
      %v935 = vmax.f32 %v759, 0.0
      %v936 = vmax.f32 %v853, 0.0
      %v937 = vmax.f32 %v761, 0.0
      %v938 = vmax.f32 %v855, 0.0
      %v939 = vmax.f32 %v764, 0.0
      %v940 = vmax.f32 %v858, 0.0
      %v941 = vmax.f32 %v766, 0.0
      %v942 = vmax.f32 %v860, 0.0
      %v943 = vmax.f32 %v769, 0.0
      %v944 = vmax.f32 %v863, 0.0
      %v945 = vmax.f32 %v771, 0.0
      %v946 = vmax.f32 %v865, 0.0
      %v947 = vmax.f32 %v774, 0.0
      %v948 = vmax.f32 %v868, 0.0
      %v949 = vmax.f32 %v776, 0.0
      %v950 = vmax.f32 %v870, 0.0
      %v951 = vmax.f32 %v779, 0.0
      %v952 = vmax.f32 %v873, 0.0
      %v953 = vmax.f32 %v781, 0.0
      %v954 = vmax.f32 %v875, 0.0
      %v955 = vmax.f32 %v784, 0.0
      %v956 = vmax.f32 %v878, 0.0
      %v957 = vmax.f32 %v786, 0.0
      %v958 = vmax.f32 %v880, 0.0
      %v959 = vmax.f32 %v789, 0.0
      %v960 = vmax.f32 %v883, 0.0
      %v961 = vmax.f32 %v791, 0.0
      %v962 = vmax.f32 %v885, 0.0
      %v963 = vmax.f32 %v794, 0.0
      %v964 = vmax.f32 %v888, 0.0
      %v965 = vmax.f32 %v796, 0.0
      %v966 = vmax.f32 %v890, 0.0
      %v967 = vmax.f32 %v799, 0.0
      %v968 = vmax.f32 %v893, 0.0
      %v969 = vmax.f32 %v801, 0.0
      %v970 = vmax.f32 %v895, 0.0
      %v971 = vmax.f32 %v804, 0.0
      %v972 = vmax.f32 %v898, 0.0
      %v973 = vmax.f32 %v806, 0.0
      %v974 = vmax.f32 %v900, 0.0
      %v975 = vmax.f32 %v809, 0.0
      %v976 = vmax.f32 %v903, 0.0
      %v977 = vmax.f32 %v811, 0.0
      %v978 = vmax.f32 %v905, 0.0
      %v979 = vmax.f32 %v814, 0.0
      %v980 = vmax.f32 %v908, 0.0
      %v981 = vmax.f32 %v816, 0.0
      %v982 = vmax.f32 %v910, 0.0
      %v983 = vmax.f32 %v819, 0.0
      %v984 = vmax.f32 %v913, 0.0
      %v985 = vmax.f32 %v821, 0.0
      %v986 = vmax.f32 %v915, 0.0
      %v987 = vmax.f32 %v824, 0.0
      %v988 = vmax.f32 %v918, 0.0
      %v989 = vmax.f32 %v826, 0.0
      %v990 = vmax.f32 %v920, 0.0
      %v991 = vmax.f32 %v829, 0.0
      %v992 = vmax.f32 %v923, 0.0
      %v993 = vmax.f32 %v831, 0.0
      %v994 = vmax.f32 %v925, 0.0
      %v995 = vpack.c.bf16 %v929, %v927
      %v996 = vpack.c.bf16 %v930, %v928
      %v997 = vpack.c.bf16 %v933, %v931
      %v998 = vpack.c.bf16 %v934, %v932
      %v999 = vpack.c.bf16 %v937, %v935
      %v1000 = vpack.c.bf16 %v938, %v936
      %v1001 = vpack.c.bf16 %v941, %v939
      %v1002 = vpack.c.bf16 %v942, %v940
      %v1003 = vpack.c.bf16 %v945, %v943
      %v1004 = vpack.c.bf16 %v946, %v944
      %v1005 = vpack.c.bf16 %v949, %v947
      %v1006 = vpack.c.bf16 %v950, %v948
      %v1007 = vpack.c.bf16 %v953, %v951
      %v1008 = vpack.c.bf16 %v954, %v952
      %v1009 = vpack.c.bf16 %v957, %v955
      %v1010 = vpack.c.bf16 %v958, %v956
      %v1011 = vpack.c.bf16 %v961, %v959
      %v1012 = vpack.c.bf16 %v962, %v960
      %v1013 = vpack.c.bf16 %v965, %v963
      %v1014 = vpack.c.bf16 %v966, %v964
      %v1015 = vpack.c.bf16 %v969, %v967
      %v1016 = vpack.c.bf16 %v970, %v968
      %v1017 = vpack.c.bf16 %v973, %v971
      %v1018 = vpack.c.bf16 %v974, %v972
      %v1019 = vpack.c.bf16 %v977, %v975
      %v1020 = vpack.c.bf16 %v978, %v976
      %v1021 = vpack.c.bf16 %v981, %v979
      %v1022 = vpack.c.bf16 %v982, %v980
      %v1023 = vpack.c.bf16 %v985, %v983
      %v1024 = vpack.c.bf16 %v986, %v984
      %v1025 = vpack.c.bf16 %v989, %v987
      %v1026 = vpack.c.bf16 %v990, %v988
      %v1027 = vpack.c.bf16 %v993, %v991
      %v1028 = vpack.c.bf16 %v994, %v992
      %v1029 = vld [vmem:[%s5] sm:$0xff]
      %v1030 = vld [vmem:[%s5 + $0x8] sm:$0xff]
      %v1031 = vld [vmem:[%s5 + $0x10] sm:$0xff]
      %v1032 = vld [vmem:[%s5 + $0x18] sm:$0xff]
      %v1033 = vld [vmem:[%s5 + $0x20] sm:$0xff]
      %v1034 = vld [vmem:[%s5 + $0x28] sm:$0xff]
      %v1035 = vld [vmem:[%s5 + $0x30] sm:$0xff]
      %v1036 = vld [vmem:[%s5 + $0x38] sm:$0xff]
      %v1037 = vld [vmem:[%s5 + $0x40] sm:$0xff]
      %v1038 = vld [vmem:[%s5 + $0x48] sm:$0xff]
      %v1039 = vld [vmem:[%s5 + $0x50] sm:$0xff]
      %v1040 = vld [vmem:[%s5 + $0x58] sm:$0xff]
      %v1041 = vld [vmem:[%s5 + $0x60] sm:$0xff]
      %v1042 = vld [vmem:[%s5 + $0x68] sm:$0xff]
      %v1043 = vld [vmem:[%s5 + $0x70] sm:$0xff]
      %v1044 = vld [vmem:[%s5 + $0x78] sm:$0xff]
      %v1045 = vld [vmem:[%s5 + $0x80] sm:$0xff]
      %v1046 = vld [vmem:[%s5 + $0x88] sm:$0xff]
      %v1047 = vld [vmem:[%s5 + $0x90] sm:$0xff]
      %v1048 = vld [vmem:[%s5 + $0x98] sm:$0xff]
      %v1049 = vld [vmem:[%s5 + $0xa0] sm:$0xff]
      %v1050 = vld [vmem:[%s5 + $0xa8] sm:$0xff]
      %v1051 = vld [vmem:[%s5 + $0xb0] sm:$0xff]
      %v1052 = vld [vmem:[%s5 + $0xb8] sm:$0xff]
      %v1053 = vld [vmem:[%s5 + $0xc0] sm:$0xff]
      %v1054 = vld [vmem:[%s5 + $0xc8] sm:$0xff]
      %v1055 = vld [vmem:[%s5 + $0xd0] sm:$0xff]
      %v1056 = vld [vmem:[%s5 + $0xd8] sm:$0xff]
      %v1057 = vld [vmem:[%s5 + $0xe0] sm:$0xff]
      %v1058 = vld [vmem:[%s5 + $0xe8] sm:$0xff]
      %v1059 = vld [vmem:[%s5 + $0xf0] sm:$0xff]
      %v1060 = vld [vmem:[%s5 + $0xf8] sm:$0xff]
      %v1061 = vld [vmem:[%s6] sm:$0x3]
      %v1063 = vperm.slane %v1061, 0
      %v1064 = vperm.slane %v1061, 1
      %v1099 = vunpack.c.l.b16 %v1029
      %v1100 = vunpack.c.h.b16 %v1029
      %v1101 = vunpack.c.l.b16 %v1030
      %v1102 = vunpack.c.h.b16 %v1030
      %v1103 = vunpack.c.l.b16 %v1031
      %v1104 = vunpack.c.h.b16 %v1031
      %v1105 = vunpack.c.l.b16 %v1032
      %v1106 = vunpack.c.h.b16 %v1032
      %v1107 = vunpack.c.l.b16 %v1033
      %v1108 = vunpack.c.h.b16 %v1033
      %v1109 = vunpack.c.l.b16 %v1034
      %v1110 = vunpack.c.h.b16 %v1034
      %v1111 = vunpack.c.l.b16 %v1035
      %v1112 = vunpack.c.h.b16 %v1035
      %v1113 = vunpack.c.l.b16 %v1036
      %v1114 = vunpack.c.h.b16 %v1036
      %v1115 = vunpack.c.l.b16 %v1037
      %v1116 = vunpack.c.h.b16 %v1037
      %v1117 = vunpack.c.l.b16 %v1038
      %v1118 = vunpack.c.h.b16 %v1038
      %v1119 = vunpack.c.l.b16 %v1039
      %v1120 = vunpack.c.h.b16 %v1039
      %v1121 = vunpack.c.l.b16 %v1040
      %v1122 = vunpack.c.h.b16 %v1040
      %v1123 = vunpack.c.l.b16 %v1041
      %v1124 = vunpack.c.h.b16 %v1041
      %v1125 = vunpack.c.l.b16 %v1042
      %v1126 = vunpack.c.h.b16 %v1042
      %v1127 = vunpack.c.l.b16 %v1043
      %v1128 = vunpack.c.h.b16 %v1043
      %v1129 = vunpack.c.l.b16 %v1044
      %v1130 = vunpack.c.h.b16 %v1044
      %v1131 = vunpack.c.l.b16 %v1045
      %v1132 = vunpack.c.h.b16 %v1045
      %v1133 = vunpack.c.l.b16 %v1046
      %v1134 = vunpack.c.h.b16 %v1046
      %v1135 = vunpack.c.l.b16 %v1047
      %v1136 = vunpack.c.h.b16 %v1047
      %v1137 = vunpack.c.l.b16 %v1048
      %v1138 = vunpack.c.h.b16 %v1048
      %v1139 = vunpack.c.l.b16 %v1049
      %v1140 = vunpack.c.h.b16 %v1049
      %v1141 = vunpack.c.l.b16 %v1050
      %v1142 = vunpack.c.h.b16 %v1050
      %v1143 = vunpack.c.l.b16 %v1051
      %v1144 = vunpack.c.h.b16 %v1051
      %v1145 = vunpack.c.l.b16 %v1052
      %v1146 = vunpack.c.h.b16 %v1052
      %v1147 = vunpack.c.l.b16 %v1053
      %v1148 = vunpack.c.h.b16 %v1053
      %v1149 = vunpack.c.l.b16 %v1054
      %v1150 = vunpack.c.h.b16 %v1054
      %v1151 = vunpack.c.l.b16 %v1055
      %v1152 = vunpack.c.h.b16 %v1055
      %v1153 = vunpack.c.l.b16 %v1056
      %v1154 = vunpack.c.h.b16 %v1056
      %v1155 = vunpack.c.l.b16 %v1057
      %v1156 = vunpack.c.h.b16 %v1057
      %v1157 = vunpack.c.l.b16 %v1058
      %v1158 = vunpack.c.h.b16 %v1058
      %v1159 = vunpack.c.l.b16 %v1059
      %v1160 = vunpack.c.h.b16 %v1059
      %v1161 = vunpack.c.l.b16 %v1060
      %v1162 = vunpack.c.h.b16 %v1060
      %v1163 = vpack.c.b16 %v1101, %v1099
      %v1164 = vpack.c.b16 %v1102, %v1100
      %v1165 = vpack.c.b16 %v1105, %v1103
      %v1166 = vpack.c.b16 %v1106, %v1104
      %v1167 = vpack.c.b16 %v1109, %v1107
      %v1168 = vpack.c.b16 %v1110, %v1108
      %v1169 = vpack.c.b16 %v1113, %v1111
      %v1170 = vpack.c.b16 %v1114, %v1112
      %v1171 = vpack.c.b16 %v1117, %v1115
      %v1172 = vpack.c.b16 %v1118, %v1116
      %v1173 = vpack.c.b16 %v1121, %v1119
      %v1174 = vpack.c.b16 %v1122, %v1120
      %v1175 = vpack.c.b16 %v1125, %v1123
      %v1176 = vpack.c.b16 %v1126, %v1124
      %v1177 = vpack.c.b16 %v1129, %v1127
      %v1178 = vpack.c.b16 %v1130, %v1128
      %v1179 = vpack.c.b16 %v1133, %v1131
      %v1180 = vpack.c.b16 %v1134, %v1132
      %v1181 = vpack.c.b16 %v1137, %v1135
      %v1182 = vpack.c.b16 %v1138, %v1136
      %v1183 = vpack.c.b16 %v1141, %v1139
      %v1184 = vpack.c.b16 %v1142, %v1140
      %v1185 = vpack.c.b16 %v1145, %v1143
      %v1186 = vpack.c.b16 %v1146, %v1144
      %v1187 = vpack.c.b16 %v1149, %v1147
      %v1188 = vpack.c.b16 %v1150, %v1148
      %v1189 = vpack.c.b16 %v1153, %v1151
      %v1190 = vpack.c.b16 %v1154, %v1152
      %v1191 = vpack.c.b16 %v1157, %v1155
      %v1192 = vpack.c.b16 %v1158, %v1156
      %v1193 = vpack.c.b16 %v1161, %v1159
      %v1194 = vpack.c.b16 %v1162, %v1160
      %1227 = vmatpush.bf16.msra.mxu0 %v1177
      %1228 = vmatpush.bf16.msra.mxu0 %v1175
      %1229 = vmatpush.bf16.msra.mxu0 %v1173
      %1230 = vmatpush.bf16.msra.mxu0 %v1171
      %1231 = vmatpush.bf16.msra.mxu0 %v1169
      %1232 = vmatpush.bf16.msra.mxu0 %v1167
      %1233 = vmatpush.bf16.msra.mxu0 %v1165
      %1234 = vmatpush.bf16.msra.mxu0 %v1163
      %1235 = vmatmul.bf16.gmra.mxu0 %v995
      %v1236 = vpop.f32.mrf.mxu0
      %v1237 = vadd.f32 %v1063, %v1236
      %v1238 = vpop.f32.mrf.mxu0
      %v1239 = vadd.f32 %v1063, %v1238
      %1240 = vmatmul.bf16.gmra.mxu0 %v997
      %v1241 = vpop.f32.mrf.mxu0
      %v1242 = vadd.f32 %v1063, %v1241
      %v1243 = vpop.f32.mrf.mxu0
      %v1244 = vadd.f32 %v1063, %v1243
      %1245 = vmatmul.bf16.gmra.mxu0 %v999
      %v1246 = vpop.f32.mrf.mxu0
      %v1247 = vadd.f32 %v1063, %v1246
      %v1248 = vpop.f32.mrf.mxu0
      %v1249 = vadd.f32 %v1063, %v1248
      %1250 = vmatmul.bf16.gmra.mxu0 %v1001
      %v1251 = vpop.f32.mrf.mxu0
      %v1252 = vadd.f32 %v1063, %v1251
      %v1253 = vpop.f32.mrf.mxu0
      %v1254 = vadd.f32 %v1063, %v1253
      %1255 = vmatmul.bf16.gmra.mxu0 %v1003
      %v1256 = vpop.f32.mrf.mxu0
      %v1257 = vadd.f32 %v1063, %v1256
      %v1258 = vpop.f32.mrf.mxu0
      %v1259 = vadd.f32 %v1063, %v1258
      %1260 = vmatmul.bf16.gmra.mxu0 %v1005
      %v1261 = vpop.f32.mrf.mxu0
      %v1262 = vadd.f32 %v1063, %v1261
      %v1263 = vpop.f32.mrf.mxu0
      %v1264 = vadd.f32 %v1063, %v1263
      %1265 = vmatmul.bf16.gmra.mxu0 %v1007
      %v1266 = vpop.f32.mrf.mxu0
      %v1267 = vadd.f32 %v1063, %v1266
      %v1268 = vpop.f32.mrf.mxu0
      %v1269 = vadd.f32 %v1063, %v1268
      %1270 = vmatmul.bf16.gmra.mxu0 %v1009
      %v1271 = vpop.f32.mrf.mxu0
      %v1272 = vadd.f32 %v1063, %v1271
      %v1273 = vpop.f32.mrf.mxu0
      %v1274 = vadd.f32 %v1063, %v1273
      %1275 = vmatmul.bf16.gmra.mxu0 %v1011
      %v1276 = vpop.f32.mrf.mxu0
      %v1277 = vadd.f32 %v1063, %v1276
      %v1278 = vpop.f32.mrf.mxu0
      %v1279 = vadd.f32 %v1063, %v1278
      %1280 = vmatmul.bf16.gmra.mxu0 %v1013
      %v1281 = vpop.f32.mrf.mxu0
      %v1282 = vadd.f32 %v1063, %v1281
      %v1283 = vpop.f32.mrf.mxu0
      %v1284 = vadd.f32 %v1063, %v1283
      %1285 = vmatmul.bf16.gmra.mxu0 %v1015
      %v1286 = vpop.f32.mrf.mxu0
      %v1287 = vadd.f32 %v1063, %v1286
      %v1288 = vpop.f32.mrf.mxu0
      %v1289 = vadd.f32 %v1063, %v1288
      %1290 = vmatmul.bf16.gmra.mxu0 %v1017
      %v1291 = vpop.f32.mrf.mxu0
      %v1292 = vadd.f32 %v1063, %v1291
      %v1293 = vpop.f32.mrf.mxu0
      %v1294 = vadd.f32 %v1063, %v1293
      %1295 = vmatmul.bf16.gmra.mxu0 %v1019
      %v1296 = vpop.f32.mrf.mxu0
      %v1297 = vadd.f32 %v1063, %v1296
      %v1298 = vpop.f32.mrf.mxu0
      %v1299 = vadd.f32 %v1063, %v1298
      %1300 = vmatmul.bf16.gmra.mxu0 %v1021
      %v1301 = vpop.f32.mrf.mxu0
      %v1302 = vadd.f32 %v1063, %v1301
      %v1303 = vpop.f32.mrf.mxu0
      %v1304 = vadd.f32 %v1063, %v1303
      %1305 = vmatmul.bf16.gmra.mxu0 %v1023
      %v1306 = vpop.f32.mrf.mxu0
      %v1307 = vadd.f32 %v1063, %v1306
      %v1308 = vpop.f32.mrf.mxu0
      %v1309 = vadd.f32 %v1063, %v1308
      %1310 = vmatmul.bf16.gmra.mxu0 %v1025
      %v1311 = vpop.f32.mrf.mxu0
      %v1312 = vadd.f32 %v1063, %v1311
      %v1313 = vpop.f32.mrf.mxu0
      %v1314 = vadd.f32 %v1063, %v1313
      %1315 = vmatmul.bf16.gmra.mxu0 %v1027
      %v1316 = vpop.f32.mrf.mxu0
      %v1317 = vadd.f32 %v1063, %v1316
      %v1318 = vpop.f32.mrf.mxu0
      %v1319 = vadd.f32 %v1063, %v1318
      %1320 = vdwg.mxu0
      %1321 = vmatpush.bf16.msra.mxu0 %v1193
      %1322 = vmatpush.bf16.msra.mxu0 %v1191
      %1323 = vmatpush.bf16.msra.mxu0 %v1189
      %1324 = vmatpush.bf16.msra.mxu0 %v1187
      %1325 = vmatpush.bf16.msra.mxu0 %v1185
      %1326 = vmatpush.bf16.msra.mxu0 %v1183
      %1327 = vmatpush.bf16.msra.mxu0 %v1181
      %1328 = vmatpush.bf16.msra.mxu0 %v1179
      %1329 = vmatmul.bf16.gmra.mxu0 %v996
      %v1330 = vpop.f32.mrf.mxu0
      %v1331 = vadd.f32 %v1237, %v1330
      %v1332 = vpop.f32.mrf.mxu0
      %v1333 = vadd.f32 %v1239, %v1332
      %1334 = vmatmul.bf16.gmra.mxu0 %v998
      %v1335 = vpop.f32.mrf.mxu0
      %v1336 = vadd.f32 %v1242, %v1335
      %v1337 = vpop.f32.mrf.mxu0
      %v1338 = vadd.f32 %v1244, %v1337
      %1339 = vmatmul.bf16.gmra.mxu0 %v1000
      %v1340 = vpop.f32.mrf.mxu0
      %v1341 = vadd.f32 %v1247, %v1340
      %v1342 = vpop.f32.mrf.mxu0
      %v1343 = vadd.f32 %v1249, %v1342
      %1344 = vmatmul.bf16.gmra.mxu0 %v1002
      %v1345 = vpop.f32.mrf.mxu0
      %v1346 = vadd.f32 %v1252, %v1345
      %v1347 = vpop.f32.mrf.mxu0
      %v1348 = vadd.f32 %v1254, %v1347
      %1349 = vmatmul.bf16.gmra.mxu0 %v1004
      %v1350 = vpop.f32.mrf.mxu0
      %v1351 = vadd.f32 %v1257, %v1350
      %v1352 = vpop.f32.mrf.mxu0
      %v1353 = vadd.f32 %v1259, %v1352
      %1354 = vmatmul.bf16.gmra.mxu0 %v1006
      %v1355 = vpop.f32.mrf.mxu0
      %v1356 = vadd.f32 %v1262, %v1355
      %v1357 = vpop.f32.mrf.mxu0
      %v1358 = vadd.f32 %v1264, %v1357
      %1359 = vmatmul.bf16.gmra.mxu0 %v1008
      %v1360 = vpop.f32.mrf.mxu0
      %v1361 = vadd.f32 %v1267, %v1360
      %v1362 = vpop.f32.mrf.mxu0
      %v1363 = vadd.f32 %v1269, %v1362
      %1364 = vmatmul.bf16.gmra.mxu0 %v1010
      %v1365 = vpop.f32.mrf.mxu0
      %v1366 = vadd.f32 %v1272, %v1365
      %v1367 = vpop.f32.mrf.mxu0
      %v1368 = vadd.f32 %v1274, %v1367
      %1369 = vmatmul.bf16.gmra.mxu0 %v1012
      %v1370 = vpop.f32.mrf.mxu0
      %v1371 = vadd.f32 %v1277, %v1370
      %v1372 = vpop.f32.mrf.mxu0
      %v1373 = vadd.f32 %v1279, %v1372
      %1374 = vmatmul.bf16.gmra.mxu0 %v1014
      %v1375 = vpop.f32.mrf.mxu0
      %v1376 = vadd.f32 %v1282, %v1375
      %v1377 = vpop.f32.mrf.mxu0
      %v1378 = vadd.f32 %v1284, %v1377
      %1379 = vmatmul.bf16.gmra.mxu0 %v1016
      %v1380 = vpop.f32.mrf.mxu0
      %v1381 = vadd.f32 %v1287, %v1380
      %v1382 = vpop.f32.mrf.mxu0
      %v1383 = vadd.f32 %v1289, %v1382
      %1384 = vmatmul.bf16.gmra.mxu0 %v1018
      %v1385 = vpop.f32.mrf.mxu0
      %v1386 = vadd.f32 %v1292, %v1385
      %v1387 = vpop.f32.mrf.mxu0
      %v1388 = vadd.f32 %v1294, %v1387
      %1389 = vmatmul.bf16.gmra.mxu0 %v1020
      %v1390 = vpop.f32.mrf.mxu0
      %v1391 = vadd.f32 %v1297, %v1390
      %v1392 = vpop.f32.mrf.mxu0
      %v1393 = vadd.f32 %v1299, %v1392
      %1394 = vmatmul.bf16.gmra.mxu0 %v1022
      %v1395 = vpop.f32.mrf.mxu0
      %v1396 = vadd.f32 %v1302, %v1395
      %v1397 = vpop.f32.mrf.mxu0
      %v1398 = vadd.f32 %v1304, %v1397
      %1399 = vmatmul.bf16.gmra.mxu0 %v1024
      %v1400 = vpop.f32.mrf.mxu0
      %v1401 = vadd.f32 %v1307, %v1400
      %v1402 = vpop.f32.mrf.mxu0
      %v1403 = vadd.f32 %v1309, %v1402
      %1404 = vmatmul.bf16.gmra.mxu0 %v1026
      %v1405 = vpop.f32.mrf.mxu0
      %v1406 = vadd.f32 %v1312, %v1405
      %v1407 = vpop.f32.mrf.mxu0
      %v1408 = vadd.f32 %v1314, %v1407
      %1409 = vmatmul.bf16.gmra.mxu0 %v1028
      %v1410 = vpop.f32.mrf.mxu0
      %v1411 = vadd.f32 %v1317, %v1410
      %v1412 = vpop.f32.mrf.mxu0
      %v1413 = vadd.f32 %v1319, %v1412
      %1414 = vdwg.mxu0
      %1415 = vmatpush.bf16.msra.mxu0 %v1178
      %1416 = vmatpush.bf16.msra.mxu0 %v1176
      %1417 = vmatpush.bf16.msra.mxu0 %v1174
      %1418 = vmatpush.bf16.msra.mxu0 %v1172
      %1419 = vmatpush.bf16.msra.mxu0 %v1170
      %1420 = vmatpush.bf16.msra.mxu0 %v1168
      %1421 = vmatpush.bf16.msra.mxu0 %v1166
      %1422 = vmatpush.bf16.msra.mxu0 %v1164
      %1423 = vmatmul.bf16.gmra.mxu0 %v995
      %v1424 = vpop.f32.mrf.mxu0
      %v1425 = vadd.f32 %v1064, %v1424
      %v1426 = vpop.f32.mrf.mxu0
      %v1427 = vadd.f32 %v1064, %v1426
      %1428 = vmatmul.bf16.gmra.mxu0 %v997
      %v1429 = vpop.f32.mrf.mxu0
      %v1430 = vadd.f32 %v1064, %v1429
      %v1431 = vpop.f32.mrf.mxu0
      %v1432 = vadd.f32 %v1064, %v1431
      %1433 = vmatmul.bf16.gmra.mxu0 %v999
      %v1434 = vpop.f32.mrf.mxu0
      %v1435 = vadd.f32 %v1064, %v1434
      %v1436 = vpop.f32.mrf.mxu0
      %v1437 = vadd.f32 %v1064, %v1436
      %1438 = vmatmul.bf16.gmra.mxu0 %v1001
      %v1439 = vpop.f32.mrf.mxu0
      %v1440 = vadd.f32 %v1064, %v1439
      %v1441 = vpop.f32.mrf.mxu0
      %v1442 = vadd.f32 %v1064, %v1441
      %1443 = vmatmul.bf16.gmra.mxu0 %v1003
      %v1444 = vpop.f32.mrf.mxu0
      %v1445 = vadd.f32 %v1064, %v1444
      %v1446 = vpop.f32.mrf.mxu0
      %v1447 = vadd.f32 %v1064, %v1446
      %1448 = vmatmul.bf16.gmra.mxu0 %v1005
      %v1449 = vpop.f32.mrf.mxu0
      %v1450 = vadd.f32 %v1064, %v1449
      %v1451 = vpop.f32.mrf.mxu0
      %v1452 = vadd.f32 %v1064, %v1451
      %1453 = vmatmul.bf16.gmra.mxu0 %v1007
      %v1454 = vpop.f32.mrf.mxu0
      %v1455 = vadd.f32 %v1064, %v1454
      %v1456 = vpop.f32.mrf.mxu0
      %v1457 = vadd.f32 %v1064, %v1456
      %1458 = vmatmul.bf16.gmra.mxu0 %v1009
      %v1459 = vpop.f32.mrf.mxu0
      %v1460 = vadd.f32 %v1064, %v1459
      %v1461 = vpop.f32.mrf.mxu0
      %v1462 = vadd.f32 %v1064, %v1461
      %1463 = vmatmul.bf16.gmra.mxu0 %v1011
      %v1464 = vpop.f32.mrf.mxu0
      %v1465 = vadd.f32 %v1064, %v1464
      %v1466 = vpop.f32.mrf.mxu0
      %v1467 = vadd.f32 %v1064, %v1466
      %1468 = vmatmul.bf16.gmra.mxu0 %v1013
      %v1469 = vpop.f32.mrf.mxu0
      %v1470 = vadd.f32 %v1064, %v1469
      %v1471 = vpop.f32.mrf.mxu0
      %v1472 = vadd.f32 %v1064, %v1471
      %1473 = vmatmul.bf16.gmra.mxu0 %v1015
      %v1474 = vpop.f32.mrf.mxu0
      %v1475 = vadd.f32 %v1064, %v1474
      %v1476 = vpop.f32.mrf.mxu0
      %v1477 = vadd.f32 %v1064, %v1476
      %1478 = vmatmul.bf16.gmra.mxu0 %v1017
      %v1479 = vpop.f32.mrf.mxu0
      %v1480 = vadd.f32 %v1064, %v1479
      %v1481 = vpop.f32.mrf.mxu0
      %v1482 = vadd.f32 %v1064, %v1481
      %1483 = vmatmul.bf16.gmra.mxu0 %v1019
      %v1484 = vpop.f32.mrf.mxu0
      %v1485 = vadd.f32 %v1064, %v1484
      %v1486 = vpop.f32.mrf.mxu0
      %v1487 = vadd.f32 %v1064, %v1486
      %1488 = vmatmul.bf16.gmra.mxu0 %v1021
      %v1489 = vpop.f32.mrf.mxu0
      %v1490 = vadd.f32 %v1064, %v1489
      %v1491 = vpop.f32.mrf.mxu0
      %v1492 = vadd.f32 %v1064, %v1491
      %1493 = vmatmul.bf16.gmra.mxu0 %v1023
      %v1494 = vpop.f32.mrf.mxu0
      %v1495 = vadd.f32 %v1064, %v1494
      %v1496 = vpop.f32.mrf.mxu0
      %v1497 = vadd.f32 %v1064, %v1496
      %1498 = vmatmul.bf16.gmra.mxu0 %v1025
      %v1499 = vpop.f32.mrf.mxu0
      %v1500 = vadd.f32 %v1064, %v1499
      %v1501 = vpop.f32.mrf.mxu0
      %v1502 = vadd.f32 %v1064, %v1501
      %1503 = vmatmul.bf16.gmra.mxu0 %v1027
      %v1504 = vpop.f32.mrf.mxu0
      %v1505 = vadd.f32 %v1064, %v1504
      %v1506 = vpop.f32.mrf.mxu0
      %v1507 = vadd.f32 %v1064, %v1506
      %1508 = vdwg.mxu0
      %1509 = vmatpush.bf16.msra.mxu0 %v1194
      %1510 = vmatpush.bf16.msra.mxu0 %v1192
      %1511 = vmatpush.bf16.msra.mxu0 %v1190
      %1512 = vmatpush.bf16.msra.mxu0 %v1188
      %1513 = vmatpush.bf16.msra.mxu0 %v1186
      %1514 = vmatpush.bf16.msra.mxu0 %v1184
      %1515 = vmatpush.bf16.msra.mxu0 %v1182
      %1516 = vmatpush.bf16.msra.mxu0 %v1180
      %1517 = vmatmul.bf16.gmra.mxu0 %v996
      %v1518 = vpop.f32.mrf.mxu0
      %v1519 = vadd.f32 %v1425, %v1518
      %v1520 = vpop.f32.mrf.mxu0
      %v1521 = vadd.f32 %v1427, %v1520
      %1522 = vmatmul.bf16.gmra.mxu0 %v998
      %v1523 = vpop.f32.mrf.mxu0
      %v1524 = vadd.f32 %v1430, %v1523
      %v1525 = vpop.f32.mrf.mxu0
      %v1526 = vadd.f32 %v1432, %v1525
      %1527 = vmatmul.bf16.gmra.mxu0 %v1000
      %v1528 = vpop.f32.mrf.mxu0
      %v1529 = vadd.f32 %v1435, %v1528
      %v1530 = vpop.f32.mrf.mxu0
      %v1531 = vadd.f32 %v1437, %v1530
      %1532 = vmatmul.bf16.gmra.mxu0 %v1002
      %v1533 = vpop.f32.mrf.mxu0
      %v1534 = vadd.f32 %v1440, %v1533
      %v1535 = vpop.f32.mrf.mxu0
      %v1536 = vadd.f32 %v1442, %v1535
      %1537 = vmatmul.bf16.gmra.mxu0 %v1004
      %v1538 = vpop.f32.mrf.mxu0
      %v1539 = vadd.f32 %v1445, %v1538
      %v1540 = vpop.f32.mrf.mxu0
      %v1541 = vadd.f32 %v1447, %v1540
      %1542 = vmatmul.bf16.gmra.mxu0 %v1006
      %v1543 = vpop.f32.mrf.mxu0
      %v1544 = vadd.f32 %v1450, %v1543
      %v1545 = vpop.f32.mrf.mxu0
      %v1546 = vadd.f32 %v1452, %v1545
      %1547 = vmatmul.bf16.gmra.mxu0 %v1008
      %v1548 = vpop.f32.mrf.mxu0
      %v1549 = vadd.f32 %v1455, %v1548
      %v1550 = vpop.f32.mrf.mxu0
      %v1551 = vadd.f32 %v1457, %v1550
      %1552 = vmatmul.bf16.gmra.mxu0 %v1010
      %v1553 = vpop.f32.mrf.mxu0
      %v1554 = vadd.f32 %v1460, %v1553
      %v1555 = vpop.f32.mrf.mxu0
      %v1556 = vadd.f32 %v1462, %v1555
      %1557 = vmatmul.bf16.gmra.mxu0 %v1012
      %v1558 = vpop.f32.mrf.mxu0
      %v1559 = vadd.f32 %v1465, %v1558
      %v1560 = vpop.f32.mrf.mxu0
      %v1561 = vadd.f32 %v1467, %v1560
      %1562 = vmatmul.bf16.gmra.mxu0 %v1014
      %v1563 = vpop.f32.mrf.mxu0
      %v1564 = vadd.f32 %v1470, %v1563
      %v1565 = vpop.f32.mrf.mxu0
      %v1566 = vadd.f32 %v1472, %v1565
      %1567 = vmatmul.bf16.gmra.mxu0 %v1016
      %v1568 = vpop.f32.mrf.mxu0
      %v1569 = vadd.f32 %v1475, %v1568
      %v1570 = vpop.f32.mrf.mxu0
      %v1571 = vadd.f32 %v1477, %v1570
      %1572 = vmatmul.bf16.gmra.mxu0 %v1018
      %v1573 = vpop.f32.mrf.mxu0
      %v1574 = vadd.f32 %v1480, %v1573
      %v1575 = vpop.f32.mrf.mxu0
      %v1576 = vadd.f32 %v1482, %v1575
      %1577 = vmatmul.bf16.gmra.mxu0 %v1020
      %v1578 = vpop.f32.mrf.mxu0
      %v1579 = vadd.f32 %v1485, %v1578
      %v1580 = vpop.f32.mrf.mxu0
      %v1581 = vadd.f32 %v1487, %v1580
      %1582 = vmatmul.bf16.gmra.mxu0 %v1022
      %v1583 = vpop.f32.mrf.mxu0
      %v1584 = vadd.f32 %v1490, %v1583
      %v1585 = vpop.f32.mrf.mxu0
      %v1586 = vadd.f32 %v1492, %v1585
      %1587 = vmatmul.bf16.gmra.mxu0 %v1024
      %v1588 = vpop.f32.mrf.mxu0
      %v1589 = vadd.f32 %v1495, %v1588
      %v1590 = vpop.f32.mrf.mxu0
      %v1591 = vadd.f32 %v1497, %v1590
      %1592 = vmatmul.bf16.gmra.mxu0 %v1026
      %v1593 = vpop.f32.mrf.mxu0
      %v1594 = vadd.f32 %v1500, %v1593
      %v1595 = vpop.f32.mrf.mxu0
      %v1596 = vadd.f32 %v1502, %v1595
      %1597 = vmatmul.bf16.gmra.mxu0 %v1028
      %v1598 = vpop.f32.mrf.mxu0
      %v1599 = vadd.f32 %v1505, %v1598
      %v1600 = vpop.f32.mrf.mxu0
      %v1601 = vadd.f32 %v1507, %v1600
      %1602 = vdwg.mxu0
      %1603 = vst [vmem:[%s282] sm:$0xff] %v1331
      %1604 = vst [vmem:[%s282 + $0x8] sm:$0xff] %v1519
      %1605 = vst [vmem:[%s282 + $0x10] sm:$0xff] %v1333
      %1606 = vst [vmem:[%s282 + $0x18] sm:$0xff] %v1521
      %1607 = vst [vmem:[%s282 + $0x20] sm:$0xff] %v1336
      %1608 = vst [vmem:[%s282 + $0x28] sm:$0xff] %v1524
      %1609 = vst [vmem:[%s282 + $0x30] sm:$0xff] %v1338
      %1610 = vst [vmem:[%s282 + $0x38] sm:$0xff] %v1526
      %1611 = vst [vmem:[%s282 + $0x40] sm:$0xff] %v1341
      %1612 = vst [vmem:[%s282 + $0x48] sm:$0xff] %v1529
      %1613 = vst [vmem:[%s282 + $0x50] sm:$0xff] %v1343
      %1614 = vst [vmem:[%s282 + $0x58] sm:$0xff] %v1531
      %1615 = vst [vmem:[%s282 + $0x60] sm:$0xff] %v1346
      %1616 = vst [vmem:[%s282 + $0x68] sm:$0xff] %v1534
      %1617 = vst [vmem:[%s282 + $0x70] sm:$0xff] %v1348
      %1618 = vst [vmem:[%s282 + $0x78] sm:$0xff] %v1536
      %1619 = vst [vmem:[%s282 + $0x80] sm:$0xff] %v1351
      %1620 = vst [vmem:[%s282 + $0x88] sm:$0xff] %v1539
      %1621 = vst [vmem:[%s282 + $0x90] sm:$0xff] %v1353
      %1622 = vst [vmem:[%s282 + $0x98] sm:$0xff] %v1541
      %1623 = vst [vmem:[%s282 + $0xa0] sm:$0xff] %v1356
      %1624 = vst [vmem:[%s282 + $0xa8] sm:$0xff] %v1544
      %1625 = vst [vmem:[%s282 + $0xb0] sm:$0xff] %v1358
      %1626 = vst [vmem:[%s282 + $0xb8] sm:$0xff] %v1546
      %1627 = vst [vmem:[%s282 + $0xc0] sm:$0xff] %v1361
      %1628 = vst [vmem:[%s282 + $0xc8] sm:$0xff] %v1549
      %1629 = vst [vmem:[%s282 + $0xd0] sm:$0xff] %v1363
      %1630 = vst [vmem:[%s282 + $0xd8] sm:$0xff] %v1551
      %1631 = vst [vmem:[%s282 + $0xe0] sm:$0xff] %v1366
      %1632 = vst [vmem:[%s282 + $0xe8] sm:$0xff] %v1554
      %1633 = vst [vmem:[%s282 + $0xf0] sm:$0xff] %v1368
      %1634 = vst [vmem:[%s282 + $0xf8] sm:$0xff] %v1556
      %1635 = vst [vmem:[%s282 + $0x100] sm:$0xff] %v1371
      %1636 = vst [vmem:[%s282 + $0x108] sm:$0xff] %v1559
      %1637 = vst [vmem:[%s282 + $0x110] sm:$0xff] %v1373
      %1638 = vst [vmem:[%s282 + $0x118] sm:$0xff] %v1561
      %1639 = vst [vmem:[%s282 + $0x120] sm:$0xff] %v1376
      %1640 = vst [vmem:[%s282 + $0x128] sm:$0xff] %v1564
      %1641 = vst [vmem:[%s282 + $0x130] sm:$0xff] %v1378
      %1642 = vst [vmem:[%s282 + $0x138] sm:$0xff] %v1566
      %1643 = vst [vmem:[%s282 + $0x140] sm:$0xff] %v1381
      %1644 = vst [vmem:[%s282 + $0x148] sm:$0xff] %v1569
      %1645 = vst [vmem:[%s282 + $0x150] sm:$0xff] %v1383
      %1646 = vst [vmem:[%s282 + $0x158] sm:$0xff] %v1571
      %1647 = vst [vmem:[%s282 + $0x160] sm:$0xff] %v1386
      %1648 = vst [vmem:[%s282 + $0x168] sm:$0xff] %v1574
      %1649 = vst [vmem:[%s282 + $0x170] sm:$0xff] %v1388
      %1650 = vst [vmem:[%s282 + $0x178] sm:$0xff] %v1576
      %1651 = vst [vmem:[%s282 + $0x180] sm:$0xff] %v1391
      %1652 = vst [vmem:[%s282 + $0x188] sm:$0xff] %v1579
      %1653 = vst [vmem:[%s282 + $0x190] sm:$0xff] %v1393
      %1654 = vst [vmem:[%s282 + $0x198] sm:$0xff] %v1581
      %1655 = vst [vmem:[%s282 + $0x1a0] sm:$0xff] %v1396
      %1656 = vst [vmem:[%s282 + $0x1a8] sm:$0xff] %v1584
      %1657 = vst [vmem:[%s282 + $0x1b0] sm:$0xff] %v1398
      %1658 = vst [vmem:[%s282 + $0x1b8] sm:$0xff] %v1586
      %1659 = vst [vmem:[%s282 + $0x1c0] sm:$0xff] %v1401
      %1660 = vst [vmem:[%s282 + $0x1c8] sm:$0xff] %v1589
      %1661 = vst [vmem:[%s282 + $0x1d0] sm:$0xff] %v1403
      %1662 = vst [vmem:[%s282 + $0x1d8] sm:$0xff] %v1591
      %1663 = vst [vmem:[%s282 + $0x1e0] sm:$0xff] %v1406
      %1664 = vst [vmem:[%s282 + $0x1e8] sm:$0xff] %v1594
      %1665 = vst [vmem:[%s282 + $0x1f0] sm:$0xff] %v1408
      %1666 = vst [vmem:[%s282 + $0x1f8] sm:$0xff] %v1596
      %1667 = vst [vmem:[%s282 + $0x200] sm:$0xff] %v1411
      %1668 = vst [vmem:[%s282 + $0x208] sm:$0xff] %v1599
      %1669 = vst [vmem:[%s282 + $0x210] sm:$0xff] %v1413
      %1670 = vst [vmem:[%s282 + $0x218] sm:$0xff] %v1601
      %s1671 = smul.u32 34, %s18
      %p1672 = scmp.lt.s32.totalorder %s1671, 67
      %s1673 = scalar_select %p1672, %s1671, 67
      %s1674 = smul.addr %s1673, 2
      %s1675 = smul.addr %s1674, 8
      %s1676 = scalar_lea.vmem %s7, %s1675
      // Predicated region
      $region49: #{transcriber_forward.1} parent=47 // pred_check
        %p1677 = pneg %p188
      $region50: #{transcriber_forward.1} parent=47 // pred_check_branch
        %1679 = sbr.rel (%p1677) target = $region52
      $region51: #{transcriber_forward.1} parent=47 // pred_region
        %s1680 = smul.u32 34, %s18
      $region52: #{transcriber_forward.1} parent=47 // pred_fallthru
        _
    $region48: #{transcriber_forward.1} parent=5 // pred_fallthru
      _
    %p1681 = scmp.le.s32.totalorder 2, %s13
    // Predicated region
    $region53: #{transcriber_forward.1} parent=5 // pred_check
      %p1682 = pneg %p1681
    $region54: #{transcriber_forward.1} parent=5 // pred_check_branch
      %1684 = sbr.rel (%p1682) target = $region56
    $region55: #{transcriber_forward.1} parent=5 // pred_region
      %s1685 = ssub.s32 %s13, 2
      // Predicated region
      $region57: #{transcriber_forward.1} parent=55 // pred_check
        %p1686 = pneg %p194
      $region58: #{transcriber_forward.1} parent=55 // pred_check_branch
        %1688 = sbr.rel (%p1686) target = $region60
      $region59: #{transcriber_forward.1} parent=55 // pred_region
        %s1689 = smul.u32 34, %s19
        %p1690 = scmp.lt.s32.totalorder %s1689, 67
        %s1691 = scalar_select %p1690, %s1689, 67
        %s1692 = smul.addr %s1691, 2
        %s1693 = smul.addr %s1692, 8
        %s1694 = scalar_lea.vmem %s7, %s1693
      $region60: #{transcriber_forward.1} parent=55 // pred_fallthru
        _
    $region56: #{transcriber_forward.1} parent=5 // pred_fallthru
      _
  $region6: #{transcriber_forward.1} parent=0 // loop_footer
    %s17 = sadd.s32 1, %s13
  $region7: #{transcriber_forward.1} parent=0 // loop_footer_branch
    %12 = sbr.rel target = $region3
  $region8: #{transcriber_forward.1} parent=0 // loop_exit
    _

</llo_original>
